<compile_context>
chip_gen: v6e
topology: v6e:2x2x1
jax: 0.10.0
libtpu: 0.0.40
codegen_flags: <defaults>
</compile_context>

<pallas_src>
import functools

import jax
import jax.numpy as jnp
import numpy as np
from jax import lax
from jax.experimental import pallas as pl
from jax.experimental.pallas import tpu as pltpu

_EPS = 1e-5  # nn.BatchNorm1d default eps


def _elu(h):
    # ELU(alpha=1). Keep exp(x)-1 (expm1 has no guaranteed Mosaic lowering).
    return jnp.where(h > 0, h, jnp.exp(jnp.minimum(h, 0.0)) - 1.0)


def _node_model_kernel(
    x_ref, row_ref, col_ref, ea_ref,
    w1_ref, b1_ref, g1_ref, be1_ref,
    w2_ref, b2_ref, g2_ref, be2_ref,
    out_ref,
    sum1_ref, sq1_ref, acc_ref, cnt_ref,
    *, n_nodes, n_edges, edge_tile):
    p = pl.program_id(0)          # 0 = BN1-statistics pass, 1 = scatter/finalize
    t = pl.program_id(1)          # edge-tile index
    n_tiles = pl.num_programs(1)

    @pl.when(jnp.logical_and(p == 0, t == 0))
    def _init():
        sum1_ref[...] = jnp.zeros_like(sum1_ref)
        sq1_ref[...] = jnp.zeros_like(sq1_ref)
        acc_ref[...] = jnp.zeros_like(acc_ref)
        cnt_ref[...] = jnp.zeros_like(cnt_ref)

    # ---- edge-MLP pre-activation for this tile (needed in both passes) -----
    # x[row] gather as a per-tile (TE, N) bf16 one-hot matmul on the MXU.
    row = row_ref[...]                                              # (TE, 1) i32
    onehot_row = (
        jax.lax.broadcasted_iota(jnp.int32, (edge_tile, n_nodes), 1) == row
    ).astype(jnp.float32).astype(jnp.bfloat16)                      # (TE, N)
    x_row = jnp.dot(onehot_row, x_ref[...],
                    preferred_element_type=jnp.float32)             # (TE, C) f32
    # Fused K=2C contraction: cat([x[row], edge_attr]) @ W1 + b1
    h1_in = jnp.concatenate(
        [x_row.astype(jnp.bfloat16), ea_ref[...]], axis=1)          # (TE, 2C)
    h1_lin = jnp.dot(h1_in, w1_ref[...],
                     preferred_element_type=jnp.float32) + b1_ref[...]

    # Validity mask for edge padding: BN1 statistics must only see real edges.
    local = jax.lax.broadcasted_iota(jnp.int32, (edge_tile, 1), 0)
    valid = (t * edge_tile + local) < n_edges                       # (TE, 1)

    @pl.when(p == 0)
    def _stats():
        hm = jnp.where(valid, h1_lin, 0.0)
        sum1_ref[...] += jnp.sum(hm, axis=0, keepdims=True)
        sq1_ref[...] += jnp.sum(hm * hm, axis=0, keepdims=True)

    @pl.when(p == 1)
    def _scatter():
        inv_e = 1.0 / n_edges
        mean1 = sum1_ref[...] * inv_e
        var1 = sq1_ref[...] * inv_e - mean1 * mean1
        h1 = (h1_lin - mean1) * lax.rsqrt(var1 + _EPS) * g1_ref[...] + be1_ref[...]
        h1 = _elu(h1)                                               # (TE, C) f32
        # scatter-add over col as a (N, TE) bf16 one-hot matmul; padded edges
        # were given col == n_nodes in the wrapper so their column is all-zero.
        col = col_ref[...]                                          # (1, TE) i32
        onehot_col = (
            jax.lax.broadcasted_iota(jnp.int32, (n_nodes, edge_tile), 0) == col
        ).astype(jnp.float32).astype(jnp.bfloat16)                  # (N, TE)
        acc_ref[...] += jnp.dot(onehot_col, h1.astype(jnp.bfloat16),
                                preferred_element_type=jnp.float32)
        cnt_ref[...] += jnp.dot(onehot_col,
                                jnp.ones((edge_tile, 1), jnp.bfloat16),
                                preferred_element_type=jnp.float32)

    @pl.when(jnp.logical_and(p == 1, t == n_tiles - 1))
    def _finalize():
        inv_cnt = pl.reciprocal(jnp.maximum(cnt_ref[...], 1.0), approx=True)
        agg = acc_ref[...] * inv_cnt                                # (N, C) f32
        # node MLP: fused K=2C contraction on cat([x, agg])
        h2_in = jnp.concatenate(
            [x_ref[...], agg.astype(jnp.bfloat16)], axis=1)         # (N, 2C)
        h2 = jnp.dot(h2_in, w2_ref[...],
                     preferred_element_type=jnp.float32) + b2_ref[...]
        inv_n = 1.0 / n_nodes
        mean2 = jnp.sum(h2, axis=0, keepdims=True) * inv_n
        var2 = jnp.sum(h2 * h2, axis=0, keepdims=True) * inv_n - mean2 * mean2
        h2 = (h2 - mean2) * lax.rsqrt(var2 + _EPS) * g2_ref[...] + be2_ref[...]
        out_ref[...] = _elu(h2)


def node_model(x, edge_index, edge_attr, params, *, edge_tile=128):
    """NodeModel forward. x:(N,C) f32, edge_index:(2,E) int, edge_attr:(E,C) f32."""
    N, C = x.shape
    E = int(edge_attr.shape[0])
    TE = int(edge_tile)
    assert TE % 128 == 0, "edge_tile must be a multiple of the 128-lane width"
    E_pad = ((E + TE - 1) // TE) * TE
    n_tiles = E_pad // TE

    row = edge_index[0].astype(jnp.int32)
    col = edge_index[1].astype(jnp.int32)
    row_p = jnp.pad(row, (0, E_pad - E)).reshape(E_pad, 1)
    # Padded edges point at a non-existent node so they never scatter.
    col_p = jnp.pad(col, (0, E_pad - E), constant_values=N).reshape(1, E_pad)
    ea_p = jnp.pad(edge_attr, ((0, E_pad - E), (0, 0))).astype(jnp.bfloat16)
    x_bf = x.astype(jnp.bfloat16)

    w1, b1, g1, be1, w2, b2, g2, be2 = params
    # PyTorch Linear weight is (out, in); kernel wants (in=2C, out=C), bf16.
    w1t = w1.T.astype(jnp.bfloat16)
    w2t = w2.T.astype(jnp.bfloat16)
    vec = lambda v: v.reshape(1, C).astype(jnp.float32)

    args = (x_bf, row_p, col_p, ea_p,
            w1t, vec(b1), vec(g1), vec(be1),
            w2t, vec(b2), vec(g2), vec(be2))

    full2 = lambda shape: pl.BlockSpec(shape, lambda p, t: (0, 0))
    in_specs = [
        full2((N, C)),                                   # x (VMEM-resident)
        pl.BlockSpec((TE, 1), lambda p, t: (t, 0)),      # row tile
        pl.BlockSpec((1, TE), lambda p, t: (0, t)),      # col tile
        pl.BlockSpec((TE, C), lambda p, t: (t, 0)),      # edge_attr tile
        full2((2 * C, C)), full2((1, C)), full2((1, C)), full2((1, C)),   # mlp1
        full2((2 * C, C)), full2((1, C)), full2((1, C)), full2((1, C)),   # mlp2
    ]
    out_spec = full2((N, C))
    scratch = [
        pltpu.VMEM((1, C), jnp.float32),   # BN1 running sum
        pltpu.VMEM((1, C), jnp.float32),   # BN1 running sum of squares
        pltpu.VMEM((N, C), jnp.float32),   # scatter-sum accumulator
        pltpu.VMEM((N, 1), jnp.float32),   # scatter counts
    ]

    # VMEM budget: resident operands + double-buffered edge tiles + scratch,
    # with headroom; never above v7x's 64 MiB physical VMEM.
    resident = (N * C * 2 + 2 * (2 * C * C * 2) + 6 * C * 4       # x, W1/W2, vecs
                + N * C * 4                                        # output block
                + 2 * C * 4 + N * C * 4 + N * 4)                   # scratch
    per_tile = 2 * (TE * C * 2 + TE * 4 + TE * 4)                  # double-buffered
    vmem_limit = int(min(64 * 1024 * 1024,
                         max(2 * (resident + per_tile) + (8 << 20), 32 << 20)))

    kernel = functools.partial(_node_model_kernel,
                               n_nodes=N, n_edges=E, edge_tile=TE)
    return pl.pallas_call(
        kernel,
        out_shape=jax.ShapeDtypeStruct((N, C), jnp.float32),
        grid_spec=pltpu.PrefetchScalarGridSpec(
            num_scalar_prefetch=0,
            grid=(2, n_tiles),            # (pass, edge tile); both sequential
            in_specs=in_specs,
            out_specs=out_spec,
            scratch_shapes=scratch),
        compiler_params=pltpu.CompilerParams(
            dimension_semantics=("arbitrary", "arbitrary"),
            vmem_limit_bytes=vmem_limit),
    )(*args)


def node_model_ref(x, edge_index, edge_attr, params):
    """Pure-JAX reference matching the PyTorch forward (training-mode BN, f32)."""
    row, col = edge_index
    w1, b1, g1, be1, w2, b2, g2, be2 = params

    def bn_elu(h, g, b):
        m = h.mean(0, keepdims=True)
        v = ((h - m) ** 2).mean(0, keepdims=True)
        hn = (h - m) / jnp.sqrt(v + _EPS) * g + b
        return jnp.where(hn > 0, hn, jnp.exp(jnp.minimum(hn, 0.0)) - 1.0)

    h1 = jnp.concatenate([x[row], edge_attr], axis=1) @ w1.T + b1
    h1 = bn_elu(h1, g1, be1)
    N = x.shape[0]
    seg_sum = jax.ops.segment_sum(h1, col, num_segments=N)
    cnt = jax.ops.segment_sum(jnp.ones((col.shape[0],), jnp.float32), col,
                              num_segments=N)
    agg = seg_sum / jnp.maximum(cnt, 1.0)[:, None]
    h2 = jnp.concatenate([x, agg], axis=1) @ w2.T + b2
    return bn_elu(h2, g2, be2)


if __name__ == "__main__":
    C = 128   # ComplexEncoder hidden_dim -> NodeModel in_channels (lane-dense)
    N = 64    # nodes
    E = 200   # edges (not a multiple of the 128-edge tile -> exercises padding)

    key = jax.random.PRNGKey(0)
    keys = jax.random.split(key, 11)

    x = jax.random.normal(keys[0], (N, C), jnp.float32)
    edge_index = jax.random.randint(keys[1], (2, E), 0, N, jnp.int32)
    edge_attr = jax.random.normal(keys[2], (E, C), jnp.float32)
    # `u` and `batch` from the PyTorch signature are unused by the forward.

    params = (
        0.1 * jax.random.normal(keys[3], (C, 2 * C), jnp.float32),    # W1 (out,in)
        0.1 * jax.random.normal(keys[4], (C,), jnp.float32),          # b1
        1.0 + 0.05 * jax.random.normal(keys[5], (C,), jnp.float32),   # gamma1
        0.05 * jax.random.normal(keys[6], (C,), jnp.float32),         # beta1
        0.1 * jax.random.normal(keys[7], (C, 2 * C), jnp.float32),    # W2
        0.1 * jax.random.normal(keys[8], (C,), jnp.float32),          # b2
        1.0 + 0.05 * jax.random.normal(keys[9], (C,), jnp.float32),   # gamma2
        0.05 * jax.random.normal(keys[10], (C,), jnp.float32),        # beta2
    )

    out = node_model(x, edge_index, edge_attr, params, edge_tile=128)
    out = jax.block_until_ready(out)

    ref = node_model_ref(x, edge_index, edge_attr, params)
    # bf16 MXU operands (f32 accumulation) -> compare at bf16-level tolerance.
    np.testing.assert_allclose(np.asarray(out), np.asarray(ref),
                               rtol=2e-2, atol=2e-2)

    print("KERNEL_OK")
</pallas_src>

<mosaic_0001>
module attributes {stable_mosaic.version = 11 : i64} {
  func.func @_node_model_kernel(%arg0: i32, %arg1: i32, %arg2: memref<64x128xbf16, #tpu.memory_space<vmem>>, %arg3: memref<128x1xi32, #tpu.memory_space<vmem>>, %arg4: memref<1x128xi32, #tpu.memory_space<vmem>>, %arg5: memref<128x128xbf16, #tpu.memory_space<vmem>>, %arg6: memref<256x128xbf16, #tpu.memory_space<vmem>>, %arg7: memref<1x128xf32, #tpu.memory_space<vmem>>, %arg8: memref<1x128xf32, #tpu.memory_space<vmem>>, %arg9: memref<1x128xf32, #tpu.memory_space<vmem>>, %arg10: memref<256x128xbf16, #tpu.memory_space<vmem>>, %arg11: memref<1x128xf32, #tpu.memory_space<vmem>>, %arg12: memref<1x128xf32, #tpu.memory_space<vmem>>, %arg13: memref<1x128xf32, #tpu.memory_space<vmem>>, %arg14: memref<64x128xf32, #tpu.memory_space<vmem>>, %arg15: memref<1x128xf32, #tpu.memory_space<vmem>>, %arg16: memref<1x128xf32, #tpu.memory_space<vmem>>, %arg17: memref<64x128xf32, #tpu.memory_space<vmem>>, %arg18: memref<64x1xf32, #tpu.memory_space<vmem>>) attributes {dimension_semantics = [#tpu.dimension_semantics<arbitrary>, #tpu.dimension_semantics<arbitrary>], iteration_bounds = array<i64: 2, 2>, scalar_prefetch = 0 : i64, scratch_operands = 4 : i64, tpu.core_type = #tpu.core_type<tc>, window_params = [{pipeline_mode = #tpu.pipeline_mode<synchronous>, transform_indices = @transform_0, window_bounds = array<i64: 64, 128>}, {transform_indices = @transform_1, window_bounds = array<i64: 128, 1>}, {transform_indices = @transform_2, window_bounds = array<i64: 1, 128>}, {transform_indices = @transform_3, window_bounds = array<i64: 128, 128>}, {pipeline_mode = #tpu.pipeline_mode<synchronous>, transform_indices = @transform_4, window_bounds = array<i64: 256, 128>}, {pipeline_mode = #tpu.pipeline_mode<synchronous>, transform_indices = @transform_5, window_bounds = array<i64: 1, 128>}, {pipeline_mode = #tpu.pipeline_mode<synchronous>, transform_indices = @transform_6, window_bounds = array<i64: 1, 128>}, {pipeline_mode = #tpu.pipeline_mode<synchronous>, transform_indices = @transform_7, window_bounds = array<i64: 1, 128>}, {pipeline_mode = #tpu.pipeline_mode<synchronous>, transform_indices = @transform_8, window_bounds = array<i64: 256, 128>}, {pipeline_mode = #tpu.pipeline_mode<synchronous>, transform_indices = @transform_9, window_bounds = array<i64: 1, 128>}, {pipeline_mode = #tpu.pipeline_mode<synchronous>, transform_indices = @transform_10, window_bounds = array<i64: 1, 128>}, {pipeline_mode = #tpu.pipeline_mode<synchronous>, transform_indices = @transform_11, window_bounds = array<i64: 1, 128>}, {pipeline_mode = #tpu.pipeline_mode<synchronous>, transform_indices = @transform_12, window_bounds = array<i64: 64, 128>}]} {
    %c0_i32 = arith.constant 0 : i32
    %0 = arith.cmpi eq, %arg0, %c0_i32 : i32
    %c0_i32_0 = arith.constant 0 : i32
    %1 = arith.cmpi eq, %arg1, %c0_i32_0 : i32
    %2 = arith.andi %0, %1 : i1
    %3 = arith.extui %2 : i1 to i32
    %c0_i32_1 = arith.constant 0 : i32
    %4 = arith.cmpi ne, %3, %c0_i32_1 : i32
    scf.if %4 {
      %cst_18 = arith.constant 0.000000e+00 : f32
      %39 = vector.broadcast %cst_18 : f32 to vector<1x128xf32>
      %c0_19 = arith.constant 0 : index
      %c0_20 = arith.constant 0 : index
      %40 = vector.load %arg15[%c0_19, %c0_20] : memref<1x128xf32, #tpu.memory_space<vmem>>, vector<1x128xf32>
      tpu.vector_store %arg15[%c0_19, %c0_20], %39 {strides = array<i32>} : memref<1x128xf32, #tpu.memory_space<vmem>>, vector<1x128xf32>,
      %cst_21 = arith.constant 0.000000e+00 : f32
      %41 = vector.broadcast %cst_21 : f32 to vector<1x128xf32>
      %c0_22 = arith.constant 0 : index
      %c0_23 = arith.constant 0 : index
      %42 = vector.load %arg16[%c0_22, %c0_23] : memref<1x128xf32, #tpu.memory_space<vmem>>, vector<1x128xf32>
      tpu.vector_store %arg16[%c0_22, %c0_23], %41 {strides = array<i32>} : memref<1x128xf32, #tpu.memory_space<vmem>>, vector<1x128xf32>,
      %cst_24 = arith.constant 0.000000e+00 : f32
      %43 = vector.broadcast %cst_24 : f32 to vector<64x128xf32>
      %c0_25 = arith.constant 0 : index
      %c0_26 = arith.constant 0 : index
      %44 = vector.load %arg17[%c0_25, %c0_26] : memref<64x128xf32, #tpu.memory_space<vmem>>, vector<64x128xf32>
      tpu.vector_store %arg17[%c0_25, %c0_26], %43 {strides = array<i32>} : memref<64x128xf32, #tpu.memory_space<vmem>>, vector<64x128xf32>,
      %cst_27 = arith.constant 0.000000e+00 : f32
      %45 = vector.broadcast %cst_27 : f32 to vector<64x1xf32>
      %c0_28 = arith.constant 0 : index
      %c0_29 = arith.constant 0 : index
      %46 = vector.load %arg18[%c0_28, %c0_29] : memref<64x1xf32, #tpu.memory_space<vmem>>, vector<64x1xf32>
      tpu.vector_store %arg18[%c0_28, %c0_29], %45 {strides = array<i32>} : memref<64x1xf32, #tpu.memory_space<vmem>>, vector<64x1xf32>,
    } else {
    }
    %c0 = arith.constant 0 : index
    %c0_2 = arith.constant 0 : index
    %5 = vector.load %arg3[%c0, %c0_2] : memref<128x1xi32, #tpu.memory_space<vmem>>, vector<128x1xi32>
    %6 = tpu.iota {dimensions = array<i32: 1>} : vector<128x64xi32>
    %7 = vector.broadcast %5 : vector<128x1xi32> to vector<128x64xi32>
    %8 = arith.cmpi eq, %6, %7 : vector<128x64xi32>
    %9 = arith.extui %8 : vector<128x64xi1> to vector<128x64xi32>
    %10 = arith.sitofp %9 : vector<128x64xi32> to vector<128x64xf32>
    %11 = arith.truncf %10 : vector<128x64xf32> to vector<128x64xbf16>
    %c0_3 = arith.constant 0 : index
    %c0_4 = arith.constant 0 : index
    %12 = vector.load %arg2[%c0_3, %c0_4] : memref<64x128xbf16, #tpu.memory_space<vmem>>, vector<64x128xbf16>
    %cst = arith.constant dense<0.000000e+00> : vector<128x128xf32>
    %13 = tpu.matmul %11, %12, %cst {dimension_numbers = #tpu.dot_dimension_numbers<[1], [0], [0], [1], [0, 0, 1, 1], [], []>} : vector<128x64xbf16>, vector<64x128xbf16>, vector<128x128xf32> -> vector<128x128xf32>
    %14 = arith.truncf %13 : vector<128x128xf32> to vector<128x128xbf16>
    %c0_5 = arith.constant 0 : index
    %c0_6 = arith.constant 0 : index
    %15 = vector.load %arg5[%c0_5, %c0_6] : memref<128x128xbf16, #tpu.memory_space<vmem>>, vector<128x128xbf16>
    %16 = tpu.concatenate %14, %15 in 1 : vector<128x128xbf16>, vector<128x128xbf16> -> vector<128x256xbf16>
    %c0_7 = arith.constant 0 : index
    %c0_8 = arith.constant 0 : index
    %17 = vector.load %arg6[%c0_7, %c0_8] : memref<256x128xbf16, #tpu.memory_space<vmem>>, vector<256x128xbf16>
    %cst_9 = arith.constant dense<0.000000e+00> : vector<128x128xf32>
    %18 = tpu.matmul %16, %17, %cst_9 {dimension_numbers = #tpu.dot_dimension_numbers<[1], [0], [0], [1], [0, 0, 1, 1], [], []>} : vector<128x256xbf16>, vector<256x128xbf16>, vector<128x128xf32> -> vector<128x128xf32>
    %c0_10 = arith.constant 0 : index
    %c0_11 = arith.constant 0 : index
    %19 = vector.load %arg7[%c0_10, %c0_11] : memref<1x128xf32, #tpu.memory_space<vmem>>, vector<1x128xf32>
    %20 = vector.broadcast %19 : vector<1x128xf32> to vector<128x128xf32>
    %21 = arith.addf %18, %20 : vector<128x128xf32>
    %22 = tpu.iota {dimensions = array<i32: 0>} : vector<128x1xi32>
    %c128_i32 = arith.constant 128 : i32
    %23 = arith.muli %arg1, %c128_i32 : i32
    %24 = vector.broadcast %23 : i32 to vector<128x1xi32>
    %25 = arith.addi %24, %22 : vector<128x1xi32>
    %c200_i32 = arith.constant 200 : i32
    %26 = vector.broadcast %c200_i32 : i32 to vector<128x1xi32>
    %27 = arith.cmpi slt, %25, %26 : vector<128x1xi32>
    %c0_i32_12 = arith.constant 0 : i32
    %28 = arith.cmpi eq, %arg0, %c0_i32_12 : i32
    %29 = arith.extui %28 : i1 to i32
    %c0_i32_13 = arith.constant 0 : i32
    %30 = arith.cmpi ne, %29, %c0_i32_13 : i32
    scf.if %30 {
      %cst_18 = arith.constant 0.000000e+00 : f32
      %39 = vector.shape_cast %27 : vector<128x1xi1> to vector<128x1xi1>
      %40 = vector.broadcast %39 : vector<128x1xi1> to vector<128x128xi1>
      %41 = vector.broadcast %cst_18 : f32 to vector<128x128xf32>
      %42 = arith.select %40, %21, %41 : vector<128x128xi1>, vector<128x128xf32>
      %c0_19 = arith.constant 0 : index
      %c0_20 = arith.constant 0 : index
      %43 = vector.load %arg15[%c0_19, %c0_20] : memref<1x128xf32, #tpu.memory_space<vmem>>, vector<1x128xf32>
      %cst_21 = arith.constant dense<0.000000e+00> : vector<128xf32>
      %44 = vector.multi_reduction <add>, %42, %cst_21 [0] : vector<128x128xf32> to vector<128xf32>
      %45 = vector.shape_cast %44 : vector<128xf32> to vector<1x128xf32>
      %46 = arith.addf %43, %45 : vector<1x128xf32>
      %c0_22 = arith.constant 0 : index
      %c0_23 = arith.constant 0 : index
      %47 = vector.load %arg15[%c0_22, %c0_23] : memref<1x128xf32, #tpu.memory_space<vmem>>, vector<1x128xf32>
      tpu.vector_store %arg15[%c0_22, %c0_23], %46 {strides = array<i32>} : memref<1x128xf32, #tpu.memory_space<vmem>>, vector<1x128xf32>,
      %c0_24 = arith.constant 0 : index
      %c0_25 = arith.constant 0 : index
      %48 = vector.load %arg16[%c0_24, %c0_25] : memref<1x128xf32, #tpu.memory_space<vmem>>, vector<1x128xf32>
      %49 = arith.mulf %42, %42 : vector<128x128xf32>
      %cst_26 = arith.constant dense<0.000000e+00> : vector<128xf32>
      %50 = vector.multi_reduction <add>, %49, %cst_26 [0] : vector<128x128xf32> to vector<128xf32>
      %51 = vector.shape_cast %50 : vector<128xf32> to vector<1x128xf32>
      %52 = arith.addf %48, %51 : vector<1x128xf32>
      %c0_27 = arith.constant 0 : index
      %c0_28 = arith.constant 0 : index
      %53 = vector.load %arg16[%c0_27, %c0_28] : memref<1x128xf32, #tpu.memory_space<vmem>>, vector<1x128xf32>
      tpu.vector_store %arg16[%c0_27, %c0_28], %52 {strides = array<i32>} : memref<1x128xf32, #tpu.memory_space<vmem>>, vector<1x128xf32>,
    } else {
    }
    %c1_i32 = arith.constant 1 : i32
    %31 = arith.cmpi eq, %arg0, %c1_i32 : i32
    %32 = arith.extui %31 : i1 to i32
    %c0_i32_14 = arith.constant 0 : i32
    %33 = arith.cmpi ne, %32, %c0_i32_14 : i32
    scf.if %33 {
      %c0_18 = arith.constant 0 : index
      %c0_19 = arith.constant 0 : index
      %39 = vector.load %arg15[%c0_18, %c0_19] : memref<1x128xf32, #tpu.memory_space<vmem>>, vector<1x128xf32>
      %cst_20 = arith.constant 5.000000e-03 : f32
      %40 = vector.broadcast %cst_20 : f32 to vector<1x128xf32>
      %41 = arith.mulf %39, %40 : vector<1x128xf32>
      %c0_21 = arith.constant 0 : index
      %c0_22 = arith.constant 0 : index
      %42 = vector.load %arg16[%c0_21, %c0_22] : memref<1x128xf32, #tpu.memory_space<vmem>>, vector<1x128xf32>
      %cst_23 = arith.constant 5.000000e-03 : f32
      %43 = vector.broadcast %cst_23 : f32 to vector<1x128xf32>
      %44 = arith.mulf %42, %43 : vector<1x128xf32>
      %45 = arith.mulf %41, %41 : vector<1x128xf32>
      %46 = arith.subf %44, %45 : vector<1x128xf32>
      %47 = vector.broadcast %41 : vector<1x128xf32> to vector<128x128xf32>
      %48 = arith.subf %21, %47 : vector<128x128xf32>
      %cst_24 = arith.constant 9.99999974E-6 : f32
      %49 = vector.broadcast %cst_24 : f32 to vector<1x128xf32>
      %50 = arith.addf %46, %49 : vector<1x128xf32>
      %51 = math.rsqrt %50 : vector<1x128xf32>
      %52 = vector.broadcast %51 : vector<1x128xf32> to vector<128x128xf32>
      %53 = arith.mulf %48, %52 : vector<128x128xf32>
      %c0_25 = arith.constant 0 : index
      %c0_26 = arith.constant 0 : index
      %54 = vector.load %arg8[%c0_25, %c0_26] : memref<1x128xf32, #tpu.memory_space<vmem>>, vector<1x128xf32>
      %55 = vector.broadcast %54 : vector<1x128xf32> to vector<128x128xf32>
      %56 = arith.mulf %53, %55 : vector<128x128xf32>
      %c0_27 = arith.constant 0 : index
      %c0_28 = arith.constant 0 : index
      %57 = vector.load %arg9[%c0_27, %c0_28] : memref<1x128xf32, #tpu.memory_space<vmem>>, vector<1x128xf32>
      %58 = vector.broadcast %57 : vector<1x128xf32> to vector<128x128xf32>
      %59 = arith.addf %56, %58 : vector<128x128xf32>
      %cst_29 = arith.constant 0.000000e+00 : f32
      %60 = vector.broadcast %cst_29 : f32 to vector<128x128xf32>
      %61 = arith.cmpf ogt, %59, %60 : vector<128x128xf32>
      %cst_30 = arith.constant 0.000000e+00 : f32
      %62 = vector.broadcast %cst_30 : f32 to vector<128x128xf32>
      %63 = arith.minimumf %59, %62 : vector<128x128xf32>
      %64 = math.exp %63 : vector<128x128xf32>
      %cst_31 = arith.constant 1.000000e+00 : f32
      %65 = vector.broadcast %cst_31 : f32 to vector<128x128xf32>
      %66 = arith.subf %64, %65 : vector<128x128xf32>
      %67 = arith.select %61, %59, %66 : vector<128x128xi1>, vector<128x128xf32>
      %c0_32 = arith.constant 0 : index
      %c0_33 = arith.constant 0 : index
      %68 = vector.load %arg4[%c0_32, %c0_33] : memref<1x128xi32, #tpu.memory_space<vmem>>, vector<1x128xi32>
      %69 = tpu.iota {dimensions = array<i32: 0>} : vector<64x128xi32>
      %70 = vector.broadcast %68 : vector<1x128xi32> to vector<64x128xi32>
      %71 = arith.cmpi eq, %69, %70 : vector<64x128xi32>
      %72 = arith.extui %71 : vector<64x128xi1> to vector<64x128xi32>
      %73 = arith.sitofp %72 : vector<64x128xi32> to vector<64x128xf32>
      %74 = arith.truncf %73 : vector<64x128xf32> to vector<64x128xbf16>
      %c0_34 = arith.constant 0 : index
      %c0_35 = arith.constant 0 : index
      %75 = vector.load %arg17[%c0_34, %c0_35] : memref<64x128xf32, #tpu.memory_space<vmem>>, vector<64x128xf32>
      %76 = arith.truncf %67 : vector<128x128xf32> to vector<128x128xbf16>
      %cst_36 = arith.constant dense<0.000000e+00> : vector<64x128xf32>
      %77 = tpu.matmul %74, %76, %cst_36 {dimension_numbers = #tpu.dot_dimension_numbers<[1], [0], [0], [1], [0, 0, 1, 1], [], []>} : vector<64x128xbf16>, vector<128x128xbf16>, vector<64x128xf32> -> vector<64x128xf32>
      %78 = arith.addf %75, %77 : vector<64x128xf32>
      %c0_37 = arith.constant 0 : index
      %c0_38 = arith.constant 0 : index
      %79 = vector.load %arg17[%c0_37, %c0_38] : memref<64x128xf32, #tpu.memory_space<vmem>>, vector<64x128xf32>
      tpu.vector_store %arg17[%c0_37, %c0_38], %78 {strides = array<i32>} : memref<64x128xf32, #tpu.memory_space<vmem>>, vector<64x128xf32>,
      %c0_39 = arith.constant 0 : index
      %c0_40 = arith.constant 0 : index
      %80 = vector.load %arg18[%c0_39, %c0_40] : memref<64x1xf32, #tpu.memory_space<vmem>>, vector<64x1xf32>
      %cst_41 = arith.constant 1.000000e+00 : bf16
      %81 = vector.broadcast %cst_41 : bf16 to vector<128x1xbf16>
      %cst_42 = arith.constant dense<0.000000e+00> : vector<64x1xf32>
      %82 = tpu.matmul %74, %81, %cst_42 {dimension_numbers = #tpu.dot_dimension_numbers<[1], [0], [0], [1], [0, 0, 1, 1], [], []>} : vector<64x128xbf16>, vector<128x1xbf16>, vector<64x1xf32> -> vector<64x1xf32>
      %83 = arith.addf %80, %82 : vector<64x1xf32>
      %c0_43 = arith.constant 0 : index
      %c0_44 = arith.constant 0 : index
      %84 = vector.load %arg18[%c0_43, %c0_44] : memref<64x1xf32, #tpu.memory_space<vmem>>, vector<64x1xf32>
      tpu.vector_store %arg18[%c0_43, %c0_44], %83 {strides = array<i32>} : memref<64x1xf32, #tpu.memory_space<vmem>>, vector<64x1xf32>,
    } else {
    }
    %c1_i32_15 = arith.constant 1 : i32
    %34 = arith.cmpi eq, %arg0, %c1_i32_15 : i32
    %c1_i32_16 = arith.constant 1 : i32
    %35 = arith.cmpi eq, %arg1, %c1_i32_16 : i32
    %36 = arith.andi %34, %35 : i1
    %37 = arith.extui %36 : i1 to i32
    %c0_i32_17 = arith.constant 0 : i32
    %38 = arith.cmpi ne, %37, %c0_i32_17 : i32
    scf.if %38 {
      %c0_18 = arith.constant 0 : index
      %c0_19 = arith.constant 0 : index
      %39 = vector.load %arg18[%c0_18, %c0_19] : memref<64x1xf32, #tpu.memory_space<vmem>>, vector<64x1xf32>
      %cst_20 = arith.constant 1.000000e+00 : f32
      %40 = vector.broadcast %cst_20 : f32 to vector<64x1xf32>
      %41 = arith.maximumf %39, %40 : vector<64x1xf32>
      %42 = tpu.reciprocal %41 {approx = true} : vector<64x1xf32> -> vector<64x1xf32>
      %c0_21 = arith.constant 0 : index
      %c0_22 = arith.constant 0 : index
      %43 = vector.load %arg17[%c0_21, %c0_22] : memref<64x128xf32, #tpu.memory_space<vmem>>, vector<64x128xf32>
      %44 = vector.broadcast %42 : vector<64x1xf32> to vector<64x128xf32>
      %45 = arith.mulf %43, %44 : vector<64x128xf32>
      %c0_23 = arith.constant 0 : index
      %c0_24 = arith.constant 0 : index
      %46 = vector.load %arg2[%c0_23, %c0_24] : memref<64x128xbf16, #tpu.memory_space<vmem>>, vector<64x128xbf16>
      %47 = arith.truncf %45 : vector<64x128xf32> to vector<64x128xbf16>
      %48 = tpu.concatenate %46, %47 in 1 : vector<64x128xbf16>, vector<64x128xbf16> -> vector<64x256xbf16>
      %c0_25 = arith.constant 0 : index
      %c0_26 = arith.constant 0 : index
      %49 = vector.load %arg10[%c0_25, %c0_26] : memref<256x128xbf16, #tpu.memory_space<vmem>>, vector<256x128xbf16>
      %cst_27 = arith.constant dense<0.000000e+00> : vector<64x128xf32>
      %50 = tpu.matmul %48, %49, %cst_27 {dimension_numbers = #tpu.dot_dimension_numbers<[1], [0], [0], [1], [0, 0, 1, 1], [], []>} : vector<64x256xbf16>, vector<256x128xbf16>, vector<64x128xf32> -> vector<64x128xf32>
      %c0_28 = arith.constant 0 : index
      %c0_29 = arith.constant 0 : index
      %51 = vector.load %arg11[%c0_28, %c0_29] : memref<1x128xf32, #tpu.memory_space<vmem>>, vector<1x128xf32>
      %52 = vector.broadcast %51 : vector<1x128xf32> to vector<64x128xf32>
      %53 = arith.addf %50, %52 : vector<64x128xf32>
      %cst_30 = arith.constant dense<0.000000e+00> : vector<128xf32>
      %54 = vector.multi_reduction <add>, %53, %cst_30 [0] : vector<64x128xf32> to vector<128xf32>
      %55 = vector.shape_cast %54 : vector<128xf32> to vector<1x128xf32>
      %cst_31 = arith.constant 1.562500e-02 : f32
      %56 = vector.broadcast %cst_31 : f32 to vector<1x128xf32>
      %57 = arith.mulf %55, %56 : vector<1x128xf32>
      %58 = arith.mulf %53, %53 : vector<64x128xf32>
      %cst_32 = arith.constant dense<0.000000e+00> : vector<128xf32>
      %59 = vector.multi_reduction <add>, %58, %cst_32 [0] : vector<64x128xf32> to vector<128xf32>
      %60 = vector.shape_cast %59 : vector<128xf32> to vector<1x128xf32>
      %cst_33 = arith.constant 1.562500e-02 : f32
      %61 = vector.broadcast %cst_33 : f32 to vector<1x128xf32>
      %62 = arith.mulf %60, %61 : vector<1x128xf32>
      %63 = arith.mulf %57, %57 : vector<1x128xf32>
      %64 = arith.subf %62, %63 : vector<1x128xf32>
      %65 = vector.broadcast %57 : vector<1x128xf32> to vector<64x128xf32>
      %66 = arith.subf %53, %65 : vector<64x128xf32>
      %cst_34 = arith.constant 9.99999974E-6 : f32
      %67 = vector.broadcast %cst_34 : f32 to vector<1x128xf32>
      %68 = arith.addf %64, %67 : vector<1x128xf32>
      %69 = math.rsqrt %68 : vector<1x128xf32>
      %70 = vector.broadcast %69 : vector<1x128xf32> to vector<64x128xf32>
      %71 = arith.mulf %66, %70 : vector<64x128xf32>
      %c0_35 = arith.constant 0 : index
      %c0_36 = arith.constant 0 : index
      %72 = vector.load %arg12[%c0_35, %c0_36] : memref<1x128xf32, #tpu.memory_space<vmem>>, vector<1x128xf32>
      %73 = vector.broadcast %72 : vector<1x128xf32> to vector<64x128xf32>
      %74 = arith.mulf %71, %73 : vector<64x128xf32>
      %c0_37 = arith.constant 0 : index
      %c0_38 = arith.constant 0 : index
      %75 = vector.load %arg13[%c0_37, %c0_38] : memref<1x128xf32, #tpu.memory_space<vmem>>, vector<1x128xf32>
      %76 = vector.broadcast %75 : vector<1x128xf32> to vector<64x128xf32>
      %77 = arith.addf %74, %76 : vector<64x128xf32>
      %cst_39 = arith.constant 0.000000e+00 : f32
      %78 = vector.broadcast %cst_39 : f32 to vector<64x128xf32>
      %79 = arith.cmpf ogt, %77, %78 : vector<64x128xf32>
      %cst_40 = arith.constant 0.000000e+00 : f32
      %80 = vector.broadcast %cst_40 : f32 to vector<64x128xf32>
      %81 = arith.minimumf %77, %80 : vector<64x128xf32>
      %82 = math.exp %81 : vector<64x128xf32>
      %cst_41 = arith.constant 1.000000e+00 : f32
      %83 = vector.broadcast %cst_41 : f32 to vector<64x128xf32>
      %84 = arith.subf %82, %83 : vector<64x128xf32>
      %85 = arith.select %79, %77, %84 : vector<64x128xi1>, vector<64x128xf32>
      %c0_42 = arith.constant 0 : index
      %c0_43 = arith.constant 0 : index
      %86 = vector.load %arg14[%c0_42, %c0_43] : memref<64x128xf32, #tpu.memory_space<vmem>>, vector<64x128xf32>
      tpu.vector_store %arg14[%c0_42, %c0_43], %85 {strides = array<i32>} : memref<64x128xf32, #tpu.memory_space<vmem>>, vector<64x128xf32>,
    } else {
    }
    return
  }
  func.func @transform_0(%arg0: i32, %arg1: i32) -> (i32, i32) {
    %c0_i32 = arith.constant 0 : i32
    %c0_i32_0 = arith.constant 0 : i32
    %c0_i32_1 = arith.constant 0 : i32
    return %c0_i32, %c0_i32_0 : i32, i32
  }
  func.func @transform_1(%arg0: i32, %arg1: i32) -> (i32, i32) {
    %c0_i32 = arith.constant 0 : i32
    %c0_i32_0 = arith.constant 0 : i32
    return %arg1, %c0_i32 : i32, i32
  }
  func.func @transform_2(%arg0: i32, %arg1: i32) -> (i32, i32) {
    %c0_i32 = arith.constant 0 : i32
    %c0_i32_0 = arith.constant 0 : i32
    return %c0_i32, %arg1 : i32, i32
  }
  func.func @transform_3(%arg0: i32, %arg1: i32) -> (i32, i32) {
    %c0_i32 = arith.constant 0 : i32
    %c0_i32_0 = arith.constant 0 : i32
    return %arg1, %c0_i32 : i32, i32
  }
  func.func @transform_4(%arg0: i32, %arg1: i32) -> (i32, i32) {
    %c0_i32 = arith.constant 0 : i32
    %c0_i32_0 = arith.constant 0 : i32
    %c0_i32_1 = arith.constant 0 : i32
    return %c0_i32, %c0_i32_0 : i32, i32
  }
  func.func @transform_5(%arg0: i32, %arg1: i32) -> (i32, i32) {
    %c0_i32 = arith.constant 0 : i32
    %c0_i32_0 = arith.constant 0 : i32
    %c0_i32_1 = arith.constant 0 : i32
    return %c0_i32, %c0_i32_0 : i32, i32
  }
  func.func @transform_6(%arg0: i32, %arg1: i32) -> (i32, i32) {
    %c0_i32 = arith.constant 0 : i32
    %c0_i32_0 = arith.constant 0 : i32
    %c0_i32_1 = arith.constant 0 : i32
    return %c0_i32, %c0_i32_0 : i32, i32
  }
  func.func @transform_7(%arg0: i32, %arg1: i32) -> (i32, i32) {
    %c0_i32 = arith.constant 0 : i32
    %c0_i32_0 = arith.constant 0 : i32
    %c0_i32_1 = arith.constant 0 : i32
    return %c0_i32, %c0_i32_0 : i32, i32
  }
  func.func @transform_8(%arg0: i32, %arg1: i32) -> (i32, i32) {
    %c0_i32 = arith.constant 0 : i32
    %c0_i32_0 = arith.constant 0 : i32
    %c0_i32_1 = arith.constant 0 : i32
    return %c0_i32, %c0_i32_0 : i32, i32
  }
  func.func @transform_9(%arg0: i32, %arg1: i32) -> (i32, i32) {
    %c0_i32 = arith.constant 0 : i32
    %c0_i32_0 = arith.constant 0 : i32
    %c0_i32_1 = arith.constant 0 : i32
    return %c0_i32, %c0_i32_0 : i32, i32
  }
  func.func @transform_10(%arg0: i32, %arg1: i32) -> (i32, i32) {
    %c0_i32 = arith.constant 0 : i32
    %c0_i32_0 = arith.constant 0 : i32
    %c0_i32_1 = arith.constant 0 : i32
    return %c0_i32, %c0_i32_0 : i32, i32
  }
  func.func @transform_11(%arg0: i32, %arg1: i32) -> (i32, i32) {
    %c0_i32 = arith.constant 0 : i32
    %c0_i32_0 = arith.constant 0 : i32
    %c0_i32_1 = arith.constant 0 : i32
    return %c0_i32, %c0_i32_0 : i32, i32
  }
  func.func @transform_12(%arg0: i32, %arg1: i32) -> (i32, i32) {
    %c0_i32 = arith.constant 0 : i32
    %c0_i32_0 = arith.constant 0 : i32
    %c0_i32_1 = arith.constant 0 : i32
    return %c0_i32, %c0_i32_0 : i32, i32
  }
}

</mosaic_0001>

<llo_original>
// kernel: tpu_custom_call.1
$region0: #{tpu_custom_call.1}
  #allocation0 [shape = 'u32[]', space=smem, size = 0x4, offset = 0x4, fixed_abs, tag = 'smem constant byte address 0x4 - core index']
  #allocation1 [shape = 'u32[144,128]{1,0:T(1,128)}', space=vmem, size = 0x12000, scoped, tag = 'internal scratch']
  #allocation2 [shape = 'f32[1,128]{1,0:T(1,128)}', space=vmem, size = 0x200, scoped, tag = 'scratch operand']
  #allocation3 [shape = 'f32[1,128]{1,0:T(1,128)}', space=vmem, size = 0x200, scoped, tag = 'scratch operand']
  #allocation4 [shape = 'f32[64,128]{1,0:T(8,128)}', space=vmem, size = 0x8000, scoped, tag = 'scratch operand']
  #allocation5 [shape = 'f32[64,1]{1,0:T(8,128)}', space=vmem, size = 0x8000, scoped, tag = 'scratch operand']
  %s0 = inlined_call_operand.hbm [shape: bf16[64,128], index: 0, kind: input, shape index: {}]
  %s1 = inlined_call_operand.vmem [shape: s32[256,1], index: 1, kind: input, shape index: {}]
  %s2 = inlined_call_operand.vmem [shape: s32[1,256], index: 2, kind: input, shape index: {}]
  %s3 = inlined_call_operand.vmem [shape: bf16[256,128], index: 3, kind: input, shape index: {}]
  %s4 = inlined_call_operand.vmem [shape: bf16[256,128], index: 4, kind: input, shape index: {}]
  %s5 = inlined_call_operand.vmem [shape: f32[1,128], index: 5, kind: input, shape index: {}]
  %s6 = inlined_call_operand.vmem [shape: f32[1,128], index: 6, kind: input, shape index: {}]
  %s7 = inlined_call_operand.vmem [shape: f32[1,128], index: 7, kind: input, shape index: {}]
  %s8 = inlined_call_operand.hbm [shape: bf16[256,128], index: 8, kind: input, shape index: {}]
  %s9 = inlined_call_operand.vmem [shape: f32[1,128], index: 9, kind: input, shape index: {}]
  %s10 = inlined_call_operand.vmem [shape: f32[1,128], index: 10, kind: input, shape index: {}]
  %s11 = inlined_call_operand.vmem [shape: f32[1,128], index: 11, kind: input, shape index: {}]
  %s12 = inlined_call_operand.hbm [shape: f32[64,128], index: 12, kind: output, shape index: {}]
  %s13 = sld [smem:[#allocation0]]
  $region105: #{tpu_custom_call.1} parent=0
    _
  %s15 = ssub.s32 1, %s13
  %s16 = scalar_select 0, %s15, %s13
  $region1: #{tpu_custom_call.1} parent=0
    #allocation6 [shape = 'u8[16384]{0}', space=vmem, size = 0x4000, scoped, tag = 'input window, operand 0, single buffered']
    #allocation7 [shape = 's32[2]{0}', space=sflag, size = 0x8, scoped, tag = 'scoped memory for tpu_custom_call.1']
    #allocation8 [shape = 's32[2]{0}', space=sflag, size = 0x8, scoped, tag = 'scoped memory for tpu_custom_call.1']
    #allocation9 [shape = 'u8[65536]{0}', space=vmem, size = 0x10000, scoped, tag = 'input window, operand 8, single buffered']
    #allocation10 [shape = 's32[1]{0}', space=sflag, size = 0x4, scoped, tag = 'scoped memory for tpu_custom_call.1']
    #allocation11 [shape = 'u8[32768]{0}', space=vmem, size = 0x8000, scoped, tag = 'output window, operand 0, single buffered']
    %17 = vsyncpa [#allocation7], 0
    %18 = vsyncpa [#allocation10], 0
    %19 = vsyncpa [#allocation8], 0
    loop: start=0, step=1, limit=6
    $region2: #{tpu_custom_call.1} parent=1 // loop_pre_header
      _
    $region3: #{tpu_custom_call.1} parent=1 // loop_header
      %s21 = sphi 0, %s25
      %p22 = scmp.ge.s32.totalorder %s21, 6
      %s28 = sphi 0, %s40
      %s29 = sphi 0, %s36
      %s30 = sphi 0, %s28
      %s31 = sphi 0, %s29
      %s32 = sphi 0, %s30
      %s33 = sphi 0, %s31
      %s41 = sphi 0, %s41
      %s43 = sphi 0, %s41
      %s44 = sphi 0, %s43
      %s58 = sphi 0, %s44
      %s64 = sphi 0, %s66
      %s67 = sphi 0, %s64
      %s68 = sphi 0, %s67
      %s84 = sphi 0, %s68
      %s90 = sphi 0, %s92
      %s93 = sphi 0, %s90
      %s94 = sphi 0, %s93
      %s110 = sphi 0, %s94
      %s116 = sphi 0, %s118
      %s119 = sphi 0, %s116
      %s120 = sphi 0, %s119
      %s136 = sphi 0, %s120
      %s140 = sphi 0, %s140
      %s142 = sphi 0, %s140
      %s143 = sphi 0, %s142
      %s157 = sphi 0, %s143
      %s161 = sphi 0, %s161
      %s163 = sphi 0, %s161
      %s164 = sphi 0, %s163
      %s178 = sphi 0, %s164
      %s182 = sphi 0, %s182
      %s184 = sphi 0, %s182
      %s185 = sphi 0, %s184
      %s199 = sphi 0, %s185
      %s203 = sphi 0, %s203
      %s205 = sphi 0, %s203
      %s206 = sphi 0, %s205
      %s220 = sphi 0, %s206
      %s224 = sphi 0, %s224
      %s226 = sphi 0, %s224
      %s227 = sphi 0, %s226
      %s241 = sphi 0, %s227
      %s245 = sphi 0, %s245
      %s247 = sphi 0, %s245
      %s248 = sphi 0, %s247
      %s262 = sphi 0, %s248
      %s266 = sphi 0, %s266
      %s268 = sphi 0, %s266
      %s269 = sphi 0, %s268
      %s283 = sphi 0, %s269
      %s287 = sphi 0, %s287
      %s289 = sphi 0, %s287
      %s290 = sphi 0, %s289
      %s304 = sphi 0, %s290
      %s308 = sphi 0, %s308
      %s310 = sphi 0, %s308
      %s311 = sphi 0, %s310
      %s325 = sphi 0, %s311
    $region4: #{tpu_custom_call.1} parent=1 // loop_header_branch
      %24 = sbr.rel (%p22) target = $region8
    $region5: #{tpu_custom_call.1} parent=1 // loop_body
      %s26 = ssub.s32 %s21, 1
      %s27 = ssub.s32 %s21, 2
      %s34 = sadd.s32 1, %s29
      %p35 = scmp.ge.s32.totalorder %s34, 2
      %s36 = scalar_select %p35, 0, %s34
      %s37 = sadd.s32 1, %s28
      %s38 = scalar_select %p35, %s37, %s28
      %p39 = scmp.ge.s32.totalorder %s38, 2
      %s40 = scalar_select %p39, 0, %s38
      %s42 = sadd.s32 %s41, 1
      %p45 = scmp.eq.s32.totalorder %s21, 3
      %p46 = scmp.ne.s32.totalorder %s41, %s43
      %p47 = scmp.eq.s32.totalorder %s21, 0
      %p48 = por %p46, %p47
      %p49 = scmp.ne.s32.totalorder %s41, %s43
      %p50 = scmp.eq.s32.totalorder %s26, 3
      %p51 = por %p49, %p50
      %p52 = scmp.ne.s32.totalorder %s43, %s44
      %p53 = scmp.eq.s32.totalorder %s26, 0
      %p54 = por %p52, %p53
      %p55 = scmp.ne.s32.totalorder %s43, %s44
      %p56 = scmp.eq.s32.totalorder %s27, 3
      %p57 = por %p55, %p56
      %p59 = scmp.ne.s32.totalorder %s44, %s58
      %p60 = scmp.eq.s32.totalorder %s27, 0
      %p61 = por %p59, %p60
      %s62 = ssub.s32 %s29, %s36
      %p63 = scmp.eq.s32.totalorder %s62, 0
      %s65 = sadd.s32 %s64, 1
      %s66 = scalar_select %p63, %s64, %s65
      %p69 = pneg %p63
      %p70 = scmp.eq.s32.totalorder %s21, 3
      %p71 = por %p69, %p70
      %p72 = scmp.ne.s32.totalorder %s64, %s67
      %p73 = scmp.eq.s32.totalorder %s21, 0
      %p74 = por %p72, %p73
      %p75 = scmp.ne.s32.totalorder %s64, %s67
      %p76 = scmp.eq.s32.totalorder %s26, 3
      %p77 = por %p75, %p76
      %p78 = scmp.ne.s32.totalorder %s67, %s68
      %p79 = scmp.eq.s32.totalorder %s26, 0
      %p80 = por %p78, %p79
      %p81 = scmp.ne.s32.totalorder %s67, %s68
      %p82 = scmp.eq.s32.totalorder %s27, 3
      %p83 = por %p81, %p82
      %p85 = scmp.ne.s32.totalorder %s68, %s84
      %p86 = scmp.eq.s32.totalorder %s27, 0
      %p87 = por %p85, %p86
      %s88 = ssub.s32 %s29, %s36
      %p89 = scmp.eq.s32.totalorder %s88, 0
      %s91 = sadd.s32 %s90, 1
      %s92 = scalar_select %p89, %s90, %s91
      %p95 = pneg %p89
      %p96 = scmp.eq.s32.totalorder %s21, 3
      %p97 = por %p95, %p96
      %p98 = scmp.ne.s32.totalorder %s90, %s93
      %p99 = scmp.eq.s32.totalorder %s21, 0
      %p100 = por %p98, %p99
      %p101 = scmp.ne.s32.totalorder %s90, %s93
      %p102 = scmp.eq.s32.totalorder %s26, 3
      %p103 = por %p101, %p102
      %p104 = scmp.ne.s32.totalorder %s93, %s94
      %p105 = scmp.eq.s32.totalorder %s26, 0
      %p106 = por %p104, %p105
      %p107 = scmp.ne.s32.totalorder %s93, %s94
      %p108 = scmp.eq.s32.totalorder %s27, 3
      %p109 = por %p107, %p108
      %p111 = scmp.ne.s32.totalorder %s94, %s110
      %p112 = scmp.eq.s32.totalorder %s27, 0
      %p113 = por %p111, %p112
      %s114 = ssub.s32 %s29, %s36
      %p115 = scmp.eq.s32.totalorder %s114, 0
      %s117 = sadd.s32 %s116, 1
      %s118 = scalar_select %p115, %s116, %s117
      %p121 = pneg %p115
      %p122 = scmp.eq.s32.totalorder %s21, 3
      %p123 = por %p121, %p122
      %p124 = scmp.ne.s32.totalorder %s116, %s119
      %p125 = scmp.eq.s32.totalorder %s21, 0
      %p126 = por %p124, %p125
      %p127 = scmp.ne.s32.totalorder %s116, %s119
      %p128 = scmp.eq.s32.totalorder %s26, 3
      %p129 = por %p127, %p128
      %p130 = scmp.ne.s32.totalorder %s119, %s120
      %p131 = scmp.eq.s32.totalorder %s26, 0
      %p132 = por %p130, %p131
      %p133 = scmp.ne.s32.totalorder %s119, %s120
      %p134 = scmp.eq.s32.totalorder %s27, 3
      %p135 = por %p133, %p134
      %p137 = scmp.ne.s32.totalorder %s120, %s136
      %p138 = scmp.eq.s32.totalorder %s27, 0
      %p139 = por %p137, %p138
      %s141 = sadd.s32 %s140, 1
      %p144 = scmp.eq.s32.totalorder %s21, 3
      %p145 = scmp.ne.s32.totalorder %s140, %s142
      %p146 = scmp.eq.s32.totalorder %s21, 0
      %p147 = por %p145, %p146
      %p148 = scmp.ne.s32.totalorder %s140, %s142
      %p149 = scmp.eq.s32.totalorder %s26, 3
      %p150 = por %p148, %p149
      %p151 = scmp.ne.s32.totalorder %s142, %s143
      %p152 = scmp.eq.s32.totalorder %s26, 0
      %p153 = por %p151, %p152
      %p154 = scmp.ne.s32.totalorder %s142, %s143
      %p155 = scmp.eq.s32.totalorder %s27, 3
      %p156 = por %p154, %p155
      %p158 = scmp.ne.s32.totalorder %s143, %s157
      %p159 = scmp.eq.s32.totalorder %s27, 0
      %p160 = por %p158, %p159
      %s162 = sadd.s32 %s161, 1
      %p165 = scmp.eq.s32.totalorder %s21, 3
      %p166 = scmp.ne.s32.totalorder %s161, %s163
      %p167 = scmp.eq.s32.totalorder %s21, 0
      %p168 = por %p166, %p167
      %p169 = scmp.ne.s32.totalorder %s161, %s163
      %p170 = scmp.eq.s32.totalorder %s26, 3
      %p171 = por %p169, %p170
      %p172 = scmp.ne.s32.totalorder %s163, %s164
      %p173 = scmp.eq.s32.totalorder %s26, 0
      %p174 = por %p172, %p173
      %p175 = scmp.ne.s32.totalorder %s163, %s164
      %p176 = scmp.eq.s32.totalorder %s27, 3
      %p177 = por %p175, %p176
      %p179 = scmp.ne.s32.totalorder %s164, %s178
      %p180 = scmp.eq.s32.totalorder %s27, 0
      %p181 = por %p179, %p180
      %s183 = sadd.s32 %s182, 1
      %p186 = scmp.eq.s32.totalorder %s21, 3
      %p187 = scmp.ne.s32.totalorder %s182, %s184
      %p188 = scmp.eq.s32.totalorder %s21, 0
      %p189 = por %p187, %p188
      %p190 = scmp.ne.s32.totalorder %s182, %s184
      %p191 = scmp.eq.s32.totalorder %s26, 3
      %p192 = por %p190, %p191
      %p193 = scmp.ne.s32.totalorder %s184, %s185
      %p194 = scmp.eq.s32.totalorder %s26, 0
      %p195 = por %p193, %p194
      %p196 = scmp.ne.s32.totalorder %s184, %s185
      %p197 = scmp.eq.s32.totalorder %s27, 3
      %p198 = por %p196, %p197
      %p200 = scmp.ne.s32.totalorder %s185, %s199
      %p201 = scmp.eq.s32.totalorder %s27, 0
      %p202 = por %p200, %p201
      %s204 = sadd.s32 %s203, 1
      %p207 = scmp.eq.s32.totalorder %s21, 3
      %p208 = scmp.ne.s32.totalorder %s203, %s205
      %p209 = scmp.eq.s32.totalorder %s21, 0
      %p210 = por %p208, %p209
      %p211 = scmp.ne.s32.totalorder %s203, %s205
      %p212 = scmp.eq.s32.totalorder %s26, 3
      %p213 = por %p211, %p212
      %p214 = scmp.ne.s32.totalorder %s205, %s206
      %p215 = scmp.eq.s32.totalorder %s26, 0
      %p216 = por %p214, %p215
      %p217 = scmp.ne.s32.totalorder %s205, %s206
      %p218 = scmp.eq.s32.totalorder %s27, 3
      %p219 = por %p217, %p218
      %p221 = scmp.ne.s32.totalorder %s206, %s220
      %p222 = scmp.eq.s32.totalorder %s27, 0
      %p223 = por %p221, %p222
      %s225 = sadd.s32 %s224, 1
      %p228 = scmp.eq.s32.totalorder %s21, 3
      %p229 = scmp.ne.s32.totalorder %s224, %s226
      %p230 = scmp.eq.s32.totalorder %s21, 0
      %p231 = por %p229, %p230
      %p232 = scmp.ne.s32.totalorder %s224, %s226
      %p233 = scmp.eq.s32.totalorder %s26, 3
      %p234 = por %p232, %p233
      %p235 = scmp.ne.s32.totalorder %s226, %s227
      %p236 = scmp.eq.s32.totalorder %s26, 0
      %p237 = por %p235, %p236
      %p238 = scmp.ne.s32.totalorder %s226, %s227
      %p239 = scmp.eq.s32.totalorder %s27, 3
      %p240 = por %p238, %p239
      %p242 = scmp.ne.s32.totalorder %s227, %s241
      %p243 = scmp.eq.s32.totalorder %s27, 0
      %p244 = por %p242, %p243
      %s246 = sadd.s32 %s245, 1
      %p249 = scmp.eq.s32.totalorder %s21, 3
      %p250 = scmp.ne.s32.totalorder %s245, %s247
      %p251 = scmp.eq.s32.totalorder %s21, 0
      %p252 = por %p250, %p251
      %p253 = scmp.ne.s32.totalorder %s245, %s247
      %p254 = scmp.eq.s32.totalorder %s26, 3
      %p255 = por %p253, %p254
      %p256 = scmp.ne.s32.totalorder %s247, %s248
      %p257 = scmp.eq.s32.totalorder %s26, 0
      %p258 = por %p256, %p257
      %p259 = scmp.ne.s32.totalorder %s247, %s248
      %p260 = scmp.eq.s32.totalorder %s27, 3
      %p261 = por %p259, %p260
      %p263 = scmp.ne.s32.totalorder %s248, %s262
      %p264 = scmp.eq.s32.totalorder %s27, 0
      %p265 = por %p263, %p264
      %s267 = sadd.s32 %s266, 1
      %p270 = scmp.eq.s32.totalorder %s21, 3
      %p271 = scmp.ne.s32.totalorder %s266, %s268
      %p272 = scmp.eq.s32.totalorder %s21, 0
      %p273 = por %p271, %p272
      %p274 = scmp.ne.s32.totalorder %s266, %s268
      %p275 = scmp.eq.s32.totalorder %s26, 3
      %p276 = por %p274, %p275
      %p277 = scmp.ne.s32.totalorder %s268, %s269
      %p278 = scmp.eq.s32.totalorder %s26, 0
      %p279 = por %p277, %p278
      %p280 = scmp.ne.s32.totalorder %s268, %s269
      %p281 = scmp.eq.s32.totalorder %s27, 3
      %p282 = por %p280, %p281
      %p284 = scmp.ne.s32.totalorder %s269, %s283
      %p285 = scmp.eq.s32.totalorder %s27, 0
      %p286 = por %p284, %p285
      %s288 = sadd.s32 %s287, 1
      %p291 = scmp.eq.s32.totalorder %s21, 3
      %p292 = scmp.ne.s32.totalorder %s287, %s289
      %p293 = scmp.eq.s32.totalorder %s21, 0
      %p294 = por %p292, %p293
      %p295 = scmp.ne.s32.totalorder %s287, %s289
      %p296 = scmp.eq.s32.totalorder %s26, 3
      %p297 = por %p295, %p296
      %p298 = scmp.ne.s32.totalorder %s289, %s290
      %p299 = scmp.eq.s32.totalorder %s26, 0
      %p300 = por %p298, %p299
      %p301 = scmp.ne.s32.totalorder %s289, %s290
      %p302 = scmp.eq.s32.totalorder %s27, 3
      %p303 = por %p301, %p302
      %p305 = scmp.ne.s32.totalorder %s290, %s304
      %p306 = scmp.eq.s32.totalorder %s27, 0
      %p307 = por %p305, %p306
      %s309 = sadd.s32 %s308, 1
      %p312 = scmp.eq.s32.totalorder %s21, 3
      %p313 = scmp.ne.s32.totalorder %s308, %s310
      %p314 = scmp.eq.s32.totalorder %s21, 0
      %p315 = por %p313, %p314
      %p316 = scmp.ne.s32.totalorder %s308, %s310
      %p317 = scmp.eq.s32.totalorder %s26, 3
      %p318 = por %p316, %p317
      %p319 = scmp.ne.s32.totalorder %s310, %s311
      %p320 = scmp.eq.s32.totalorder %s26, 0
      %p321 = por %p319, %p320
      %p322 = scmp.ne.s32.totalorder %s310, %s311
      %p323 = scmp.eq.s32.totalorder %s27, 3
      %p324 = por %p322, %p323
      %p326 = scmp.ne.s32.totalorder %s311, %s325
      %p327 = scmp.eq.s32.totalorder %s27, 0
      %p328 = por %p326, %p327
      %p329 = scmp.le.s32.totalorder 1, %s21
      %p330 = scmp.lt.s32.totalorder %s21, 5
      %p331 = pnand %p329, %p330
      %p332 = pneg %p331
      // Predicated region
      $region9: #{tpu_custom_call.1} parent=5 // pred_check
        _
      $region10: #{tpu_custom_call.1} parent=5 // pred_check_branch
        %334 = sbr.rel (%p331) target = $region12
      $region11: #{tpu_custom_call.1} parent=5 // pred_region
        %s335 = ssub.s32 %s21, 1
        // Predicated region
        $region13: #{tpu_custom_call.1} parent=11 // pred_check
          %p336 = pneg %p54
        $region14: #{tpu_custom_call.1} parent=11 // pred_check_branch
          %338 = sbr.rel (%p336) target = $region16
        $region15: #{tpu_custom_call.1} parent=11 // pred_region
          %s340 = ssub.s32 512, 512
          %341 = vsyncadd [#allocation7], %s340
          %s342 = sshll.u32 [#allocation6], 4
          %s343 = int_to_ptr.vmem [resolvable:$true] %s342
          %348 = dma.hbm_to_vmem [thread:$0]  %s0, 512, %s343, [#allocation7], 64, 64, 4
        $region16: #{tpu_custom_call.1} parent=11 // pred_fallthru
          _
        // Predicated region
        $region17: #{tpu_custom_call.1} parent=11 // pred_check
          %p349 = pneg %p153
        $region18: #{tpu_custom_call.1} parent=11 // pred_check_branch
          %351 = sbr.rel (%p349) target = $region20
        $region19: #{tpu_custom_call.1} parent=11 // pred_region
          _
        $region20: #{tpu_custom_call.1} parent=11 // pred_fallthru
          _
        // Predicated region
        $region21: #{tpu_custom_call.1} parent=11 // pred_check
          %p352 = pneg %p174
        $region22: #{tpu_custom_call.1} parent=11 // pred_check_branch
          %354 = sbr.rel (%p352) target = $region24
        $region23: #{tpu_custom_call.1} parent=11 // pred_region
          _
        $region24: #{tpu_custom_call.1} parent=11 // pred_fallthru
          _
        // Predicated region
        $region25: #{tpu_custom_call.1} parent=11 // pred_check
          %p355 = pneg %p195
        $region26: #{tpu_custom_call.1} parent=11 // pred_check_branch
          %357 = sbr.rel (%p355) target = $region28
        $region27: #{tpu_custom_call.1} parent=11 // pred_region
          _
        $region28: #{tpu_custom_call.1} parent=11 // pred_fallthru
          _
        // Predicated region
        $region29: #{tpu_custom_call.1} parent=11 // pred_check
          %p358 = pneg %p216
        $region30: #{tpu_custom_call.1} parent=11 // pred_check_branch
          %360 = sbr.rel (%p358) target = $region32
        $region31: #{tpu_custom_call.1} parent=11 // pred_region
          _
        $region32: #{tpu_custom_call.1} parent=11 // pred_fallthru
          _
        // Predicated region
        $region33: #{tpu_custom_call.1} parent=11 // pred_check
          %p361 = pneg %p237
        $region34: #{tpu_custom_call.1} parent=11 // pred_check_branch
          %363 = sbr.rel (%p361) target = $region36
        $region35: #{tpu_custom_call.1} parent=11 // pred_region
          %s365 = ssub.s32 2048, 2048
          %366 = vsyncadd [#allocation10], %s365
          %s367 = sshll.u32 [#allocation9], 4
          %s368 = int_to_ptr.vmem [resolvable:$true] %s367
          %373 = dma.hbm_to_vmem [thread:$0]  %s8, 2048, %s368, [#allocation10], 64, 64, 4
        $region36: #{tpu_custom_call.1} parent=11 // pred_fallthru
          _
        // Predicated region
        $region37: #{tpu_custom_call.1} parent=11 // pred_check
          %p374 = pneg %p258
        $region38: #{tpu_custom_call.1} parent=11 // pred_check_branch
          %376 = sbr.rel (%p374) target = $region40
        $region39: #{tpu_custom_call.1} parent=11 // pred_region
          _
        $region40: #{tpu_custom_call.1} parent=11 // pred_fallthru
          _
        // Predicated region
        $region41: #{tpu_custom_call.1} parent=11 // pred_check
          %p377 = pneg %p279
        $region42: #{tpu_custom_call.1} parent=11 // pred_check_branch
          %379 = sbr.rel (%p377) target = $region44
        $region43: #{tpu_custom_call.1} parent=11 // pred_region
          _
        $region44: #{tpu_custom_call.1} parent=11 // pred_fallthru
          _
        // Predicated region
        $region45: #{tpu_custom_call.1} parent=11 // pred_check
          %p380 = pneg %p300
        $region46: #{tpu_custom_call.1} parent=11 // pred_check_branch
          %382 = sbr.rel (%p380) target = $region48
        $region47: #{tpu_custom_call.1} parent=11 // pred_region
          _
        $region48: #{tpu_custom_call.1} parent=11 // pred_fallthru
          _
      $region12: #{tpu_custom_call.1} parent=5 // pred_fallthru
        _
      %p383 = scmp.lt.s32.totalorder %s21, 4
      // Predicated region
      $region49: #{tpu_custom_call.1} parent=5 // pred_check
        %p384 = pneg %p383
      $region50: #{tpu_custom_call.1} parent=5 // pred_check_branch
        %386 = sbr.rel (%p384) target = $region52
      $region51: #{tpu_custom_call.1} parent=5 // pred_region
        // Predicated region
        $region53: #{tpu_custom_call.1} parent=51 // pred_check
          %p387 = pneg %p74
        $region54: #{tpu_custom_call.1} parent=51 // pred_check_branch
          %389 = sbr.rel (%p387) target = $region56
        $region55: #{tpu_custom_call.1} parent=51 // pred_region
          %s390 = smul.u32 16, %s29
          %p391 = scmp.lt.s32.totalorder %s390, 31
          %s392 = scalar_select %p391, %s390, 31
          %s393 = smul.addr %s392, 8
          %s394 = scalar_lea.vmem %s1, %s393
          %s395 = smul.u32 16, %s29
        $region56: #{tpu_custom_call.1} parent=51 // pred_fallthru
          _
        // Predicated region
        $region57: #{tpu_custom_call.1} parent=51 // pred_check
          %p396 = pneg %p100
        $region58: #{tpu_custom_call.1} parent=51 // pred_check_branch
          %398 = sbr.rel (%p396) target = $region60
        $region59: #{tpu_custom_call.1} parent=51 // pred_region
          %p399 = scmp.lt.s32.totalorder %s29, 1
          %s400 = scalar_select %p399, %s29, 1
          %s401 = scalar_lea.vmem %s2, %s400
        $region60: #{tpu_custom_call.1} parent=51 // pred_fallthru
          _
        // Predicated region
        $region61: #{tpu_custom_call.1} parent=51 // pred_check
          %p402 = pneg %p126
        $region62: #{tpu_custom_call.1} parent=51 // pred_check_branch
          %404 = sbr.rel (%p402) target = $region64
        $region63: #{tpu_custom_call.1} parent=51 // pred_region
          %s405 = smul.u32 16, %s29
          %p406 = scmp.lt.s32.totalorder %s405, 31
          %s407 = scalar_select %p406, %s405, 31
          %s408 = smul.addr %s407, 4
          %s409 = scalar_lea.vmem %s3, %s408
          %s410 = smul.u32 16, %s29
        $region64: #{tpu_custom_call.1} parent=51 // pred_fallthru
          _
      $region52: #{tpu_custom_call.1} parent=5 // pred_fallthru
        _
      %p411 = scmp.le.s32.totalorder 1, %s21
      %p412 = scmp.lt.s32.totalorder %s21, 5
      %p413 = pnand %p411, %p412
      %p414 = pneg %p413
      // Predicated region
      $region65: #{tpu_custom_call.1} parent=5 // pred_check
        _
      $region66: #{tpu_custom_call.1} parent=5 // pred_check_branch
        %416 = sbr.rel (%p413) target = $region68
      $region67: #{tpu_custom_call.1} parent=5 // pred_region
        %s417 = ssub.s32 %s21, 1
        // Predicated region
        $region69: #{tpu_custom_call.1} parent=67 // pred_check
          %p418 = pneg %p54
        $region70: #{tpu_custom_call.1} parent=67 // pred_check_branch
          %420 = sbr.rel (%p418) target = $region72
        $region71: #{tpu_custom_call.1} parent=67 // pred_region
          %421 = dma.done [#allocation7], 512
        $region72: #{tpu_custom_call.1} parent=67 // pred_fallthru
          _
        // Predicated region
        $region73: #{tpu_custom_call.1} parent=67 // pred_check
          %p422 = pneg %p237
        $region74: #{tpu_custom_call.1} parent=67 // pred_check_branch
          %424 = sbr.rel (%p422) target = $region76
        $region75: #{tpu_custom_call.1} parent=67 // pred_region
          %425 = dma.done [#allocation10], 2048
        $region76: #{tpu_custom_call.1} parent=67 // pred_fallthru
          _
        %p426 = pneg %p54
        %p427 = pneg %p51
        %s428 = smul.u32 16, %s31
        %p429 = scmp.lt.s32.totalorder %s428, 31
        %s430 = scalar_select %p429, %s428, 31
        %s431 = smul.addr %s430, 8
        %s432 = scalar_lea.vmem %s1, %s431
        %p433 = pneg %p80
        %p434 = pneg %p77
        %p435 = scmp.lt.s32.totalorder %s31, 1
        %s436 = scalar_select %p435, %s31, 1
        %s437 = scalar_lea.vmem %s2, %s436
        %p438 = pneg %p106
        %p439 = pneg %p103
        %s440 = smul.u32 16, %s31
        %p441 = scmp.lt.s32.totalorder %s440, 31
        %s442 = scalar_select %p441, %s440, 31
        %s443 = smul.addr %s442, 4
        %s444 = scalar_lea.vmem %s3, %s443
        %p445 = pneg %p132
        %p446 = pneg %p129
        %p447 = pneg %p153
        %p448 = pneg %p150
        %p449 = pneg %p174
        %p450 = pneg %p171
        %p451 = pneg %p195
        %p452 = pneg %p192
        %p453 = pneg %p216
        %p454 = pneg %p213
        %p455 = pneg %p237
        %p456 = pneg %p234
        %p457 = pneg %p258
        %p458 = pneg %p255
        %p459 = pneg %p279
        %p460 = pneg %p276
        %p461 = pneg %p300
        %p462 = pneg %p297
        %p463 = pneg %p321
        %p464 = pneg %p318
        %s465 = smul.u32 16, %s31
        %p466 = scmp.lt.s32.totalorder %s465, 31
        %s467 = scalar_select %p466, %s465, 31
        %s468 = smul.addr %s467, 8
        %s469 = scalar_lea.vmem %s1, %s468
        %s470 = smul.u32 16, %s31
        %p471 = scmp.lt.s32.totalorder %s31, 1
        %s472 = scalar_select %p471, %s31, 1
        %s473 = scalar_lea.vmem %s2, %s472
        %s474 = smul.u32 16, %s31
        %p475 = scmp.lt.s32.totalorder %s474, 31
        %s476 = scalar_select %p475, %s474, 31
        %s477 = smul.addr %s476, 4
        %s478 = scalar_lea.vmem %s3, %s477
        %s479 = smul.u32 16, %s31
        %p482 = scmp.eq.s32.totalorder %s30, 0
        %p483 = scmp.eq.s32.totalorder %s31, 0
        %p484 = pnand %p482, %p483
        %p485 = pneg %p484
        // Predicated region
        $region77: #{tpu_custom_call.1} parent=67 // pred_check
          _
        $region78: #{tpu_custom_call.1} parent=67 // pred_check_branch
          %487 = sbr.rel (%p484) target = $region80
        $region79: #{tpu_custom_call.1} parent=67 // pred_region
          %488 = vst [vmem:[#allocation2] sm:$0x1] 0.0
          %489 = vst [vmem:[#allocation3] sm:$0x1] 0.0
          %490 = vst [vmem:[#allocation4] sm:$0xff] 0.0
          %491 = vst [vmem:[#allocation4 + $0x8] sm:$0xff] 0.0
          %492 = vst [vmem:[#allocation4 + $0x10] sm:$0xff] 0.0
          %493 = vst [vmem:[#allocation4 + $0x18] sm:$0xff] 0.0
          %494 = vst [vmem:[#allocation4 + $0x20] sm:$0xff] 0.0
          %495 = vst [vmem:[#allocation4 + $0x28] sm:$0xff] 0.0
          %496 = vst [vmem:[#allocation4 + $0x30] sm:$0xff] 0.0
          %497 = vst [vmem:[#allocation4 + $0x38] sm:$0xff] 0.0
          %vm498 = vcmask 7168
          %499 = vst.msk [vmem:[#allocation5] sm:$0xff] %vm498, 0.0
          %500 = vst.msk [vmem:[#allocation5 + $0x8] sm:$0xff] %vm498, 0.0
          %501 = vst.msk [vmem:[#allocation5 + $0x10] sm:$0xff] %vm498, 0.0
          %502 = vst.msk [vmem:[#allocation5 + $0x18] sm:$0xff] %vm498, 0.0
          %503 = vst.msk [vmem:[#allocation5 + $0x20] sm:$0xff] %vm498, 0.0
          %504 = vst.msk [vmem:[#allocation5 + $0x28] sm:$0xff] %vm498, 0.0
          %505 = vst.msk [vmem:[#allocation5 + $0x30] sm:$0xff] %vm498, 0.0
          %506 = vst.msk [vmem:[#allocation5 + $0x38] sm:$0xff] %vm498, 0.0
        $region80: #{tpu_custom_call.1} parent=67 // pred_fallthru
          _
        %v507 = vld [vmem:[%s469] sm:$0xff]
        %v508 = vld [vmem:[%s469 + $0x8] sm:$0xff]
        %v509 = vld [vmem:[%s469 + $0x10] sm:$0xff]
        %v510 = vld [vmem:[%s469 + $0x18] sm:$0xff]
        %v511 = vld [vmem:[%s469 + $0x20] sm:$0xff]
        %v512 = vld [vmem:[%s469 + $0x28] sm:$0xff]
        %v513 = vld [vmem:[%s469 + $0x30] sm:$0xff]
        %v514 = vld [vmem:[%s469 + $0x38] sm:$0xff]
        %v515 = vld [vmem:[%s469 + $0x40] sm:$0xff]
        %v516 = vld [vmem:[%s469 + $0x48] sm:$0xff]
        %v517 = vld [vmem:[%s469 + $0x50] sm:$0xff]
        %v518 = vld [vmem:[%s469 + $0x58] sm:$0xff]
        %v519 = vld [vmem:[%s469 + $0x60] sm:$0xff]
        %v520 = vld [vmem:[%s469 + $0x68] sm:$0xff]
        %v521 = vld [vmem:[%s469 + $0x70] sm:$0xff]
        %v522 = vld [vmem:[%s469 + $0x78] sm:$0xff]
        %v523 = vlaneseq
        %v524 = vand.u32 %v523, 127
        %525 = vset.pattern.permute.xlu0 0
        %526 = vperm.xlu0 %525, %v507
        %v527 = vpop.permute.xlu0 %526
        %528 = vset.pattern.permute.xlu0 0
        %529 = vperm.xlu0 %528, %v508
        %v530 = vpop.permute.xlu0 %529
        %531 = vset.pattern.permute.xlu0 0
        %532 = vperm.xlu0 %531, %v509
        %v533 = vpop.permute.xlu0 %532
        %534 = vset.pattern.permute.xlu0 0
        %535 = vperm.xlu0 %534, %v510
        %v536 = vpop.permute.xlu0 %535
        %537 = vset.pattern.permute.xlu0 0
        %538 = vperm.xlu0 %537, %v511
        %v539 = vpop.permute.xlu0 %538
        %540 = vset.pattern.permute.xlu0 0
        %541 = vperm.xlu0 %540, %v512
        %v542 = vpop.permute.xlu0 %541
        %543 = vset.pattern.permute.xlu0 0
        %544 = vperm.xlu0 %543, %v513
        %v545 = vpop.permute.xlu0 %544
        %546 = vset.pattern.permute.xlu0 0
        %547 = vperm.xlu0 %546, %v514
        %v548 = vpop.permute.xlu0 %547
        %549 = vset.pattern.permute.xlu0 0
        %550 = vperm.xlu0 %549, %v515
        %v551 = vpop.permute.xlu0 %550
        %552 = vset.pattern.permute.xlu0 0
        %553 = vperm.xlu0 %552, %v516
        %v554 = vpop.permute.xlu0 %553
        %555 = vset.pattern.permute.xlu0 0
        %556 = vperm.xlu0 %555, %v517
        %v557 = vpop.permute.xlu0 %556
        %558 = vset.pattern.permute.xlu0 0
        %559 = vperm.xlu0 %558, %v518
        %v560 = vpop.permute.xlu0 %559
        %561 = vset.pattern.permute.xlu0 0
        %562 = vperm.xlu0 %561, %v519
        %v563 = vpop.permute.xlu0 %562
        %564 = vset.pattern.permute.xlu0 0
        %565 = vperm.xlu0 %564, %v520
        %v566 = vpop.permute.xlu0 %565
        %567 = vset.pattern.permute.xlu0 0
        %568 = vperm.xlu0 %567, %v521
        %v569 = vpop.permute.xlu0 %568
        %570 = vset.pattern.permute.xlu0 0
        %571 = vperm.xlu0 %570, %v522
        %v572 = vpop.permute.xlu0 %571
        %vm573 = vcmp.eq.s32.totalorder %v524, %v527
        %vm574 = vcmp.eq.s32.totalorder %v524, %v530
        %vm575 = vcmp.eq.s32.totalorder %v524, %v533
        %vm576 = vcmp.eq.s32.totalorder %v524, %v536
        %vm577 = vcmp.eq.s32.totalorder %v524, %v539
        %vm578 = vcmp.eq.s32.totalorder %v524, %v542
        %vm579 = vcmp.eq.s32.totalorder %v524, %v545
        %vm580 = vcmp.eq.s32.totalorder %v524, %v548
        %vm581 = vcmp.eq.s32.totalorder %v524, %v551
        %vm582 = vcmp.eq.s32.totalorder %v524, %v554
        %vm583 = vcmp.eq.s32.totalorder %v524, %v557
        %vm584 = vcmp.eq.s32.totalorder %v524, %v560
        %vm585 = vcmp.eq.s32.totalorder %v524, %v563
        %vm586 = vcmp.eq.s32.totalorder %v524, %v566
        %vm587 = vcmp.eq.s32.totalorder %v524, %v569
        %vm588 = vcmp.eq.s32.totalorder %v524, %v572
        %v589 = vsel %vm573, 1, 0
        %v590 = vsel %vm574, 1, 0
        %v591 = vsel %vm575, 1, 0
        %v592 = vsel %vm576, 1, 0
        %v593 = vsel %vm577, 1, 0
        %v594 = vsel %vm578, 1, 0
        %v595 = vsel %vm579, 1, 0
        %v596 = vsel %vm580, 1, 0
        %v597 = vsel %vm581, 1, 0
        %v598 = vsel %vm582, 1, 0
        %v599 = vsel %vm583, 1, 0
        %v600 = vsel %vm584, 1, 0
        %v601 = vsel %vm585, 1, 0
        %v602 = vsel %vm586, 1, 0
        %v603 = vsel %vm587, 1, 0
        %v604 = vsel %vm588, 1, 0
        %v605 = vcvt.s32.f32 %v589
        %v606 = vcvt.s32.f32 %v590
        %v607 = vcvt.s32.f32 %v591
        %v608 = vcvt.s32.f32 %v592
        %v609 = vcvt.s32.f32 %v593
        %v610 = vcvt.s32.f32 %v594
        %v611 = vcvt.s32.f32 %v595
        %v612 = vcvt.s32.f32 %v596
        %v613 = vcvt.s32.f32 %v597
        %v614 = vcvt.s32.f32 %v598
        %v615 = vcvt.s32.f32 %v599
        %v616 = vcvt.s32.f32 %v600
        %v617 = vcvt.s32.f32 %v601
        %v618 = vcvt.s32.f32 %v602
        %v619 = vcvt.s32.f32 %v603
        %v620 = vcvt.s32.f32 %v604
        %v621 = vpack.c.bf16 %v606, %v605
        %v622 = vpack.c.bf16 %v608, %v607
        %v623 = vpack.c.bf16 %v610, %v609
        %v624 = vpack.c.bf16 %v612, %v611
        %v625 = vpack.c.bf16 %v614, %v613
        %v626 = vpack.c.bf16 %v616, %v615
        %v627 = vpack.c.bf16 %v618, %v617
        %v628 = vpack.c.bf16 %v620, %v619
        %v629 = vld [vmem:[#allocation6] sm:$0xf]
        %v630 = vld [vmem:[#allocation6 + $0x4] sm:$0xf]
        %v631 = vld [vmem:[#allocation6 + $0x8] sm:$0xf]
        %v632 = vld [vmem:[#allocation6 + $0xc] sm:$0xf]
        %v633 = vld [vmem:[#allocation6 + $0x10] sm:$0xf]
        %v634 = vld [vmem:[#allocation6 + $0x14] sm:$0xf]
        %v635 = vld [vmem:[#allocation6 + $0x18] sm:$0xf]
        %v636 = vld [vmem:[#allocation6 + $0x1c] sm:$0xf]
        %v645 = vunpack.c.l.b16 %v629
        %v646 = vunpack.c.l.b16 %v630
        %v647 = vunpack.c.l.b16 %v631
        %v648 = vunpack.c.l.b16 %v632
        %v649 = vunpack.c.l.b16 %v633
        %v650 = vunpack.c.l.b16 %v634
        %v651 = vunpack.c.l.b16 %v635
        %v652 = vunpack.c.l.b16 %v636
        %v653 = vpack.c.b16 %v646, %v645
        %v654 = vpack.c.b16 %v648, %v647
        %v655 = vpack.c.b16 %v650, %v649
        %v656 = vpack.c.b16 %v652, %v651
        %vm661 = vcmask 523264
        %v663 = vsel %vm661, %v621, 0
        %v666 = vsel %vm661, %v622, 0
        %v669 = vsel %vm661, %v623, 0
        %v672 = vsel %vm661, %v624, 0
        %v675 = vsel %vm661, %v625, 0
        %v678 = vsel %vm661, %v626, 0
        %v681 = vsel %vm661, %v627, 0
        %v684 = vsel %vm661, %v628, 0
        %686 = vmatprep.subr.bf16.mxu0 0
        %687 = vmatpush1.bf16.msra.mxu0 0
        %688 = vmatprep.subr.bf16.mxu0 0
        %689 = vmatpush1.bf16.msra.mxu0 0
        %690 = vmatprep.subr.bf16.mxu0 0
        %691 = vmatpush1.bf16.msra.mxu0 0
        %692 = vmatprep.subr.bf16.mxu0 0
        %693 = vmatpush1.bf16.msra.mxu0 0
        %694 = vmatprep.subr.bf16.mxu0 0
        %695 = vmatpush1.bf16.msra.mxu0 %v656
        %696 = vmatprep.subr.bf16.mxu0 0
        %697 = vmatpush1.bf16.msra.mxu0 %v655
        %698 = vmatprep.subr.bf16.mxu0 0
        %699 = vmatpush1.bf16.msra.mxu0 %v654
        %700 = vmatprep.subr.bf16.mxu0 0
        %701 = vmatpush1.bf16.msra.mxu0 %v653
        %702 = vmatprep.subr.bf16.mxu0 0
        %703 = vmatpush2.bf16.msra.mxu0 0
        %704 = vmatprep.subr.bf16.mxu0 0
        %705 = vmatpush2.bf16.msra.mxu0 0
        %706 = vmatprep.subr.bf16.mxu0 0
        %707 = vmatpush2.bf16.msra.mxu0 0
        %708 = vmatprep.subr.bf16.mxu0 0
        %709 = vmatpush2.bf16.msra.mxu0 0
        %710 = vmatprep.subr.bf16.mxu0 0
        %711 = vmatpush2.bf16.msra.mxu0 0
        %712 = vmatprep.subr.bf16.mxu0 0
        %713 = vmatpush2.bf16.msra.mxu0 0
        %714 = vmatprep.subr.bf16.mxu0 0
        %715 = vmatpush2.bf16.msra.mxu0 0
        %716 = vmatprep.subr.bf16.mxu0 0
        %717 = vmatpush2.bf16.msra.mxu0 0
        %718 = vmatprep.mubr.bf16.mxu0 0
        %719 = vmatmul.mubr.bf16.gmra.mxu0 %v663
        %v720 = vpop.f32.mrf.mxu0
        %v721 = vadd.f32 0.0, %v720
        %v722 = vpop.f32.mrf.mxu0
        %v723 = vpop.f32.mrf.mxu0
        %v724 = vadd.f32 0.0, %v723
        %v725 = vpop.f32.mrf.mxu0
        %726 = vmatprep.mubr.bf16.mxu0 0
        %727 = vmatmul.mubr.bf16.gmra.mxu0 %v666
        %v728 = vpop.f32.mrf.mxu0
        %v729 = vadd.f32 0.0, %v728
        %v730 = vpop.f32.mrf.mxu0
        %v731 = vpop.f32.mrf.mxu0
        %v732 = vadd.f32 0.0, %v731
        %v733 = vpop.f32.mrf.mxu0
        %734 = vmatprep.mubr.bf16.mxu0 0
        %735 = vmatmul.mubr.bf16.gmra.mxu0 %v669
        %v736 = vpop.f32.mrf.mxu0
        %v737 = vadd.f32 0.0, %v736
        %v738 = vpop.f32.mrf.mxu0
        %v739 = vpop.f32.mrf.mxu0
        %v740 = vadd.f32 0.0, %v739
        %v741 = vpop.f32.mrf.mxu0
        %742 = vmatprep.mubr.bf16.mxu0 0
        %743 = vmatmul.mubr.bf16.gmra.mxu0 %v672
        %v744 = vpop.f32.mrf.mxu0
        %v745 = vadd.f32 0.0, %v744
        %v746 = vpop.f32.mrf.mxu0
        %v747 = vpop.f32.mrf.mxu0
        %v748 = vadd.f32 0.0, %v747
        %v749 = vpop.f32.mrf.mxu0
        %750 = vmatprep.mubr.bf16.mxu0 0
        %751 = vmatmul.mubr.bf16.gmra.mxu0 %v675
        %v752 = vpop.f32.mrf.mxu0
        %v753 = vadd.f32 0.0, %v752
        %v754 = vpop.f32.mrf.mxu0
        %v755 = vpop.f32.mrf.mxu0
        %v756 = vadd.f32 0.0, %v755
        %v757 = vpop.f32.mrf.mxu0
        %758 = vmatprep.mubr.bf16.mxu0 0
        %759 = vmatmul.mubr.bf16.gmra.mxu0 %v678
        %v760 = vpop.f32.mrf.mxu0
        %v761 = vadd.f32 0.0, %v760
        %v762 = vpop.f32.mrf.mxu0
        %v763 = vpop.f32.mrf.mxu0
        %v764 = vadd.f32 0.0, %v763
        %v765 = vpop.f32.mrf.mxu0
        %766 = vmatprep.mubr.bf16.mxu0 0
        %767 = vmatmul.mubr.bf16.gmra.mxu0 %v681
        %v768 = vpop.f32.mrf.mxu0
        %v769 = vadd.f32 0.0, %v768
        %v770 = vpop.f32.mrf.mxu0
        %v771 = vpop.f32.mrf.mxu0
        %v772 = vadd.f32 0.0, %v771
        %v773 = vpop.f32.mrf.mxu0
        %774 = vmatprep.mubr.bf16.mxu0 0
        %775 = vmatmul.mubr.bf16.gmra.mxu0 %v684
        %v776 = vpop.f32.mrf.mxu0
        %v777 = vadd.f32 0.0, %v776
        %v778 = vpop.f32.mrf.mxu0
        %v779 = vpop.f32.mrf.mxu0
        %v780 = vadd.f32 0.0, %v779
        %v781 = vpop.f32.mrf.mxu0
        %782 = vdwg.mxu0
        %v783 = vpack.c.bf16 %v724, %v721
        %v784 = vpack.c.bf16 %v732, %v729
        %v785 = vpack.c.bf16 %v740, %v737
        %v786 = vpack.c.bf16 %v748, %v745
        %v787 = vpack.c.bf16 %v756, %v753
        %v788 = vpack.c.bf16 %v764, %v761
        %v789 = vpack.c.bf16 %v772, %v769
        %v790 = vpack.c.bf16 %v780, %v777
        %v791 = vld [vmem:[%s478] sm:$0xf]
        %v792 = vld [vmem:[%s478 + $0x4] sm:$0xf]
        %v793 = vld [vmem:[%s478 + $0x8] sm:$0xf]
        %v794 = vld [vmem:[%s478 + $0xc] sm:$0xf]
        %v795 = vld [vmem:[%s478 + $0x10] sm:$0xf]
        %v796 = vld [vmem:[%s478 + $0x14] sm:$0xf]
        %v797 = vld [vmem:[%s478 + $0x18] sm:$0xf]
        %v798 = vld [vmem:[%s478 + $0x1c] sm:$0xf]
        %v799 = vld [vmem:[%s478 + $0x20] sm:$0xf]
        %v800 = vld [vmem:[%s478 + $0x24] sm:$0xf]
        %v801 = vld [vmem:[%s478 + $0x28] sm:$0xf]
        %v802 = vld [vmem:[%s478 + $0x2c] sm:$0xf]
        %v803 = vld [vmem:[%s478 + $0x30] sm:$0xf]
        %v804 = vld [vmem:[%s478 + $0x34] sm:$0xf]
        %v805 = vld [vmem:[%s478 + $0x38] sm:$0xf]
        %v806 = vld [vmem:[%s478 + $0x3c] sm:$0xf]
        %v823 = vunpack.c.l.b16 %v791
        %v824 = vunpack.c.l.b16 %v792
        %v825 = vunpack.c.l.b16 %v793
        %v826 = vunpack.c.l.b16 %v794
        %v827 = vunpack.c.l.b16 %v795
        %v828 = vunpack.c.l.b16 %v796
        %v829 = vunpack.c.l.b16 %v797
        %v830 = vunpack.c.l.b16 %v798
        %v831 = vunpack.c.l.b16 %v799
        %v832 = vunpack.c.l.b16 %v800
        %v833 = vunpack.c.l.b16 %v801
        %v834 = vunpack.c.l.b16 %v802
        %v835 = vunpack.c.l.b16 %v803
        %v836 = vunpack.c.l.b16 %v804
        %v837 = vunpack.c.l.b16 %v805
        %v838 = vunpack.c.l.b16 %v806
        %v839 = vpack.c.b16 %v824, %v823
        %v840 = vpack.c.b16 %v826, %v825
        %v841 = vpack.c.b16 %v828, %v827
        %v842 = vpack.c.b16 %v830, %v829
        %v843 = vpack.c.b16 %v832, %v831
        %v844 = vpack.c.b16 %v834, %v833
        %v845 = vpack.c.b16 %v836, %v835
        %v846 = vpack.c.b16 %v838, %v837
        %v855 = vld [vmem:[%s4] sm:$0xf]
        %v856 = vld [vmem:[%s4 + $0x4] sm:$0xf]
        %v857 = vld [vmem:[%s4 + $0x8] sm:$0xf]
        %v858 = vld [vmem:[%s4 + $0xc] sm:$0xf]
        %v859 = vld [vmem:[%s4 + $0x10] sm:$0xf]
        %v860 = vld [vmem:[%s4 + $0x14] sm:$0xf]
        %v861 = vld [vmem:[%s4 + $0x18] sm:$0xf]
        %v862 = vld [vmem:[%s4 + $0x1c] sm:$0xf]
        %v863 = vld [vmem:[%s4 + $0x20] sm:$0xf]
        %v864 = vld [vmem:[%s4 + $0x24] sm:$0xf]
        %v865 = vld [vmem:[%s4 + $0x28] sm:$0xf]
        %v866 = vld [vmem:[%s4 + $0x2c] sm:$0xf]
        %v867 = vld [vmem:[%s4 + $0x30] sm:$0xf]
        %v868 = vld [vmem:[%s4 + $0x34] sm:$0xf]
        %v869 = vld [vmem:[%s4 + $0x38] sm:$0xf]
        %v870 = vld [vmem:[%s4 + $0x3c] sm:$0xf]
        %v871 = vld [vmem:[%s4 + $0x40] sm:$0xf]
        %v872 = vld [vmem:[%s4 + $0x44] sm:$0xf]
        %v873 = vld [vmem:[%s4 + $0x48] sm:$0xf]
        %v874 = vld [vmem:[%s4 + $0x4c] sm:$0xf]
        %v875 = vld [vmem:[%s4 + $0x50] sm:$0xf]
        %v876 = vld [vmem:[%s4 + $0x54] sm:$0xf]
        %v877 = vld [vmem:[%s4 + $0x58] sm:$0xf]
        %v878 = vld [vmem:[%s4 + $0x5c] sm:$0xf]
        %v879 = vld [vmem:[%s4 + $0x60] sm:$0xf]
        %v880 = vld [vmem:[%s4 + $0x64] sm:$0xf]
        %v881 = vld [vmem:[%s4 + $0x68] sm:$0xf]
        %v882 = vld [vmem:[%s4 + $0x6c] sm:$0xf]
        %v883 = vld [vmem:[%s4 + $0x70] sm:$0xf]
        %v884 = vld [vmem:[%s4 + $0x74] sm:$0xf]
        %v885 = vld [vmem:[%s4 + $0x78] sm:$0xf]
        %v886 = vld [vmem:[%s4 + $0x7c] sm:$0xf]
        %v887 = vld [vmem:[%s5] sm:$0x1]
        %v889 = vlaneseq
        %v890 = vshrl.u32 %v889, 7
        %v891 = vsub.s32 0, %v890
        %v892 = vrot.slane %v887, %v891
        %v926 = vunpack.c.l.b16 %v855
        %v927 = vunpack.c.l.b16 %v856
        %v928 = vunpack.c.l.b16 %v857
        %v929 = vunpack.c.l.b16 %v858
        %v930 = vunpack.c.l.b16 %v859
        %v931 = vunpack.c.l.b16 %v860
        %v932 = vunpack.c.l.b16 %v861
        %v933 = vunpack.c.l.b16 %v862
        %v934 = vunpack.c.l.b16 %v863
        %v935 = vunpack.c.l.b16 %v864
        %v936 = vunpack.c.l.b16 %v865
        %v937 = vunpack.c.l.b16 %v866
        %v938 = vunpack.c.l.b16 %v867
        %v939 = vunpack.c.l.b16 %v868
        %v940 = vunpack.c.l.b16 %v869
        %v941 = vunpack.c.l.b16 %v870
        %v942 = vunpack.c.l.b16 %v871
        %v943 = vunpack.c.l.b16 %v872
        %v944 = vunpack.c.l.b16 %v873
        %v945 = vunpack.c.l.b16 %v874
        %v946 = vunpack.c.l.b16 %v875
        %v947 = vunpack.c.l.b16 %v876
        %v948 = vunpack.c.l.b16 %v877
        %v949 = vunpack.c.l.b16 %v878
        %v950 = vunpack.c.l.b16 %v879
        %v951 = vunpack.c.l.b16 %v880
        %v952 = vunpack.c.l.b16 %v881
        %v953 = vunpack.c.l.b16 %v882
        %v954 = vunpack.c.l.b16 %v883
        %v955 = vunpack.c.l.b16 %v884
        %v956 = vunpack.c.l.b16 %v885
        %v957 = vunpack.c.l.b16 %v886
        %v958 = vpack.c.b16 %v927, %v926
        %v959 = vpack.c.b16 %v929, %v928
        %v960 = vpack.c.b16 %v931, %v930
        %v961 = vpack.c.b16 %v933, %v932
        %v962 = vpack.c.b16 %v935, %v934
        %v963 = vpack.c.b16 %v937, %v936
        %v964 = vpack.c.b16 %v939, %v938
        %v965 = vpack.c.b16 %v941, %v940
        %v966 = vpack.c.b16 %v943, %v942
        %v967 = vpack.c.b16 %v945, %v944
        %v968 = vpack.c.b16 %v947, %v946
        %v969 = vpack.c.b16 %v949, %v948
        %v970 = vpack.c.b16 %v951, %v950
        %v971 = vpack.c.b16 %v953, %v952
        %v972 = vpack.c.b16 %v955, %v954
        %v973 = vpack.c.b16 %v957, %v956
        %990 = vmatprep.subr.bf16.mxu0 0
        %991 = vmatpush1.bf16.msra.mxu0 %v965
        %992 = vmatprep.subr.bf16.mxu0 0
        %993 = vmatpush1.bf16.msra.mxu0 %v964
        %994 = vmatprep.subr.bf16.mxu0 0
        %995 = vmatpush1.bf16.msra.mxu0 %v963
        %996 = vmatprep.subr.bf16.mxu0 0
        %997 = vmatpush1.bf16.msra.mxu0 %v962
        %998 = vmatprep.subr.bf16.mxu0 0
        %999 = vmatpush1.bf16.msra.mxu0 %v961
        %1000 = vmatprep.subr.bf16.mxu0 0
        %1001 = vmatpush1.bf16.msra.mxu0 %v960
        %1002 = vmatprep.subr.bf16.mxu0 0
        %1003 = vmatpush1.bf16.msra.mxu0 %v959
        %1004 = vmatprep.subr.bf16.mxu0 0
        %1005 = vmatpush1.bf16.msra.mxu0 %v958
        %1006 = vmatprep.subr.bf16.mxu0 0
        %1007 = vmatpush2.bf16.msra.mxu0 %v973
        %1008 = vmatprep.subr.bf16.mxu0 0
        %1009 = vmatpush2.bf16.msra.mxu0 %v972
        %1010 = vmatprep.subr.bf16.mxu0 0
        %1011 = vmatpush2.bf16.msra.mxu0 %v971
        %1012 = vmatprep.subr.bf16.mxu0 0
        %1013 = vmatpush2.bf16.msra.mxu0 %v970
        %1014 = vmatprep.subr.bf16.mxu0 0
        %1015 = vmatpush2.bf16.msra.mxu0 %v969
        %1016 = vmatprep.subr.bf16.mxu0 0
        %1017 = vmatpush2.bf16.msra.mxu0 %v968
        %1018 = vmatprep.subr.bf16.mxu0 0
        %1019 = vmatpush2.bf16.msra.mxu0 %v967
        %1020 = vmatprep.subr.bf16.mxu0 0
        %1021 = vmatpush2.bf16.msra.mxu0 %v966
        %1022 = vmatprep.mubr.bf16.mxu0 %v839
        %1023 = vmatmul.mubr.bf16.gmra.mxu0 %v783
        %v1024 = vpop.f32.mrf.mxu0
        %v1025 = vadd.f32 %v892, %v1024
        %v1026 = vpop.f32.mrf.mxu0
        %v1027 = vpop.f32.mrf.mxu0
        %v1028 = vadd.f32 %v892, %v1027
        %v1029 = vpop.f32.mrf.mxu0
        %1030 = vmatprep.mubr.bf16.mxu0 %v840
        %1031 = vmatmul.mubr.bf16.gmra.mxu0 %v784
        %v1032 = vpop.f32.mrf.mxu0
        %v1033 = vadd.f32 %v892, %v1032
        %v1034 = vpop.f32.mrf.mxu0
        %v1035 = vpop.f32.mrf.mxu0
        %v1036 = vadd.f32 %v892, %v1035
        %v1037 = vpop.f32.mrf.mxu0
        %1038 = vmatprep.mubr.bf16.mxu0 %v841
        %1039 = vmatmul.mubr.bf16.gmra.mxu0 %v785
        %v1040 = vpop.f32.mrf.mxu0
        %v1041 = vadd.f32 %v892, %v1040
        %v1042 = vpop.f32.mrf.mxu0
        %v1043 = vpop.f32.mrf.mxu0
        %v1044 = vadd.f32 %v892, %v1043
        %v1045 = vpop.f32.mrf.mxu0
        %1046 = vmatprep.mubr.bf16.mxu0 %v842
        %1047 = vmatmul.mubr.bf16.gmra.mxu0 %v786
        %v1048 = vpop.f32.mrf.mxu0
        %v1049 = vadd.f32 %v892, %v1048
        %v1050 = vpop.f32.mrf.mxu0
        %v1051 = vpop.f32.mrf.mxu0
        %v1052 = vadd.f32 %v892, %v1051
        %v1053 = vpop.f32.mrf.mxu0
        %1054 = vmatprep.mubr.bf16.mxu0 %v843
        %1055 = vmatmul.mubr.bf16.gmra.mxu0 %v787
        %v1056 = vpop.f32.mrf.mxu0
        %v1057 = vadd.f32 %v892, %v1056
        %v1058 = vpop.f32.mrf.mxu0
        %v1059 = vpop.f32.mrf.mxu0
        %v1060 = vadd.f32 %v892, %v1059
        %v1061 = vpop.f32.mrf.mxu0
        %1062 = vmatprep.mubr.bf16.mxu0 %v844
        %1063 = vmatmul.mubr.bf16.gmra.mxu0 %v788
        %v1064 = vpop.f32.mrf.mxu0
        %v1065 = vadd.f32 %v892, %v1064
        %v1066 = vpop.f32.mrf.mxu0
        %v1067 = vpop.f32.mrf.mxu0
        %v1068 = vadd.f32 %v892, %v1067
        %v1069 = vpop.f32.mrf.mxu0
        %1070 = vmatprep.mubr.bf16.mxu0 %v845
        %1071 = vmatmul.mubr.bf16.gmra.mxu0 %v789
        %v1072 = vpop.f32.mrf.mxu0
        %v1073 = vadd.f32 %v892, %v1072
        %v1074 = vpop.f32.mrf.mxu0
        %v1075 = vpop.f32.mrf.mxu0
        %v1076 = vadd.f32 %v892, %v1075
        %v1077 = vpop.f32.mrf.mxu0
        %1078 = vmatprep.mubr.bf16.mxu0 %v846
        %1079 = vmatmul.mubr.bf16.gmra.mxu0 %v790
        %v1080 = vpop.f32.mrf.mxu0
        %v1081 = vadd.f32 %v892, %v1080
        %v1082 = vpop.f32.mrf.mxu0
        %v1083 = vpop.f32.mrf.mxu0
        %v1084 = vadd.f32 %v892, %v1083
        %v1085 = vpop.f32.mrf.mxu0
        %1086 = vdwg.mxu0
        %v1087 = vlaneseq
        %v1088 = vshrl.u32 %v1087, 7
        %v1089 = vadd.s32 %v1088, 8
        %v1090 = vadd.s32 %v1088, 16
        %v1091 = vadd.s32 %v1088, 24
        %v1092 = vadd.s32 %v1088, 32
        %v1093 = vadd.s32 %v1088, 40
        %v1094 = vadd.s32 %v1088, 48
        %v1095 = vadd.s32 %v1088, 56
        %v1096 = vadd.s32 %v1088, 64
        %v1097 = vadd.s32 %v1088, 72
        %v1098 = vadd.s32 %v1088, 80
        %v1099 = vadd.s32 %v1088, 88
        %v1100 = vadd.s32 %v1088, 96
        %v1101 = vadd.s32 %v1088, 104
        %v1102 = vadd.s32 %v1088, 112
        %v1103 = vadd.s32 %v1088, 120
        %s1104 = smul.u32 %s31, 128
        %v1105 = vstv %s1104
        %v1106 = vadd.s32 %v1105, %v1088
        %v1107 = vadd.s32 %v1105, %v1089
        %v1108 = vadd.s32 %v1105, %v1090
        %v1109 = vadd.s32 %v1105, %v1091
        %v1110 = vadd.s32 %v1105, %v1092
        %v1111 = vadd.s32 %v1105, %v1093
        %v1112 = vadd.s32 %v1105, %v1094
        %v1113 = vadd.s32 %v1105, %v1095
        %v1114 = vadd.s32 %v1105, %v1096
        %v1115 = vadd.s32 %v1105, %v1097
        %v1116 = vadd.s32 %v1105, %v1098
        %v1117 = vadd.s32 %v1105, %v1099
        %v1118 = vadd.s32 %v1105, %v1100
        %v1119 = vadd.s32 %v1105, %v1101
        %v1120 = vadd.s32 %v1105, %v1102
        %v1121 = vadd.s32 %v1105, %v1103
        %vm1122 = vcmp.lt.s32.totalorder %v1106, 200
        %vm1123 = vcmp.lt.s32.totalorder %v1107, 200
        %vm1124 = vcmp.lt.s32.totalorder %v1108, 200
        %vm1125 = vcmp.lt.s32.totalorder %v1109, 200
        %vm1126 = vcmp.lt.s32.totalorder %v1110, 200
        %vm1127 = vcmp.lt.s32.totalorder %v1111, 200
        %vm1128 = vcmp.lt.s32.totalorder %v1112, 200
        %vm1129 = vcmp.lt.s32.totalorder %v1113, 200
        %vm1130 = vcmp.lt.s32.totalorder %v1114, 200
        %vm1131 = vcmp.lt.s32.totalorder %v1115, 200
        %vm1132 = vcmp.lt.s32.totalorder %v1116, 200
        %vm1133 = vcmp.lt.s32.totalorder %v1117, 200
        %vm1134 = vcmp.lt.s32.totalorder %v1118, 200
        %vm1135 = vcmp.lt.s32.totalorder %v1119, 200
        %vm1136 = vcmp.lt.s32.totalorder %v1120, 200
        %vm1137 = vcmp.lt.s32.totalorder %v1121, 200
        // Predicated region
        $region81: #{tpu_custom_call.1} parent=67 // pred_check
          %p1138 = pneg %p482
        $region82: #{tpu_custom_call.1} parent=67 // pred_check_branch
          %1140 = sbr.rel (%p1138) target = $region84
        $region83: #{tpu_custom_call.1} parent=67 // pred_region
          %v1141 = vsel %vm1122, 1, 0
          %v1142 = vsel %vm1123, 1, 0
          %v1143 = vsel %vm1124, 1, 0
          %v1144 = vsel %vm1125, 1, 0
          %v1145 = vsel %vm1126, 1, 0
          %v1146 = vsel %vm1127, 1, 0
          %v1147 = vsel %vm1128, 1, 0
          %v1148 = vsel %vm1129, 1, 0
          %v1149 = vsel %vm1130, 1, 0
          %v1150 = vsel %vm1131, 1, 0
          %v1151 = vsel %vm1132, 1, 0
          %v1152 = vsel %vm1133, 1, 0
          %v1153 = vsel %vm1134, 1, 0
          %v1154 = vsel %vm1135, 1, 0
          %v1155 = vsel %vm1136, 1, 0
          %v1156 = vsel %vm1137, 1, 0
          %vm1157 = vcmp.eq.s32.totalorder %v1141, 1
          %vm1158 = vcmp.eq.s32.totalorder %v1142, 1
          %vm1159 = vcmp.eq.s32.totalorder %v1143, 1
          %vm1160 = vcmp.eq.s32.totalorder %v1144, 1
          %vm1161 = vcmp.eq.s32.totalorder %v1145, 1
          %vm1162 = vcmp.eq.s32.totalorder %v1146, 1
          %vm1163 = vcmp.eq.s32.totalorder %v1147, 1
          %vm1164 = vcmp.eq.s32.totalorder %v1148, 1
          %vm1165 = vcmp.eq.s32.totalorder %v1149, 1
          %vm1166 = vcmp.eq.s32.totalorder %v1150, 1
          %vm1167 = vcmp.eq.s32.totalorder %v1151, 1
          %vm1168 = vcmp.eq.s32.totalorder %v1152, 1
          %vm1169 = vcmp.eq.s32.totalorder %v1153, 1
          %vm1170 = vcmp.eq.s32.totalorder %v1154, 1
          %vm1171 = vcmp.eq.s32.totalorder %v1155, 1
          %vm1172 = vcmp.eq.s32.totalorder %v1156, 1
          %v1173 = vsel %vm1157, %v1025, 0.0
          %v1174 = vsel %vm1158, %v1028, 0.0
          %v1175 = vsel %vm1159, %v1033, 0.0
          %v1176 = vsel %vm1160, %v1036, 0.0
          %v1177 = vsel %vm1161, %v1041, 0.0
          %v1178 = vsel %vm1162, %v1044, 0.0
          %v1179 = vsel %vm1163, %v1049, 0.0
          %v1180 = vsel %vm1164, %v1052, 0.0
          %v1181 = vsel %vm1165, %v1057, 0.0
          %v1182 = vsel %vm1166, %v1060, 0.0
          %v1183 = vsel %vm1167, %v1065, 0.0
          %v1184 = vsel %vm1168, %v1068, 0.0
          %v1185 = vsel %vm1169, %v1073, 0.0
          %v1186 = vsel %vm1170, %v1076, 0.0
          %v1187 = vsel %vm1171, %v1081, 0.0
          %v1188 = vsel %vm1172, %v1084, 0.0
          %v1189 = vld [vmem:[#allocation2] sm:$0x1]
          %v1190 = vadd.f32 %v1173, %v1174
          %v1191 = vadd.f32 %v1190, %v1175
          %v1192 = vadd.f32 %v1191, %v1176
          %v1193 = vadd.f32 %v1192, %v1177
          %v1194 = vadd.f32 %v1193, %v1178
          %v1195 = vadd.f32 %v1194, %v1179
          %v1196 = vadd.f32 %v1195, %v1180
          %v1197 = vadd.f32 %v1196, %v1181
          %v1198 = vadd.f32 %v1197, %v1182
          %v1199 = vadd.f32 %v1198, %v1183
          %v1200 = vadd.f32 %v1199, %v1184
          %v1201 = vadd.f32 %v1200, %v1185
          %v1202 = vadd.f32 %v1201, %v1186
          %v1203 = vadd.f32 %v1202, %v1187
          %v1204 = vadd.f32 %v1203, %v1188
          %v1205 = vrot.slane %v1204, 4
          %v1206 = vadd.f32 %v1204, %v1205
          %v1207 = vrot.slane %v1206, 2
          %v1208 = vadd.f32 %v1206, %v1207
          %v1209 = vrot.slane %v1208, 1
          %v1210 = vadd.f32 %v1208, %v1209
          %v1211 = vadd.f32 %v1189, %v1210
          %1212 = vst [vmem:[#allocation2] sm:$0x1] %v1211
          %v1213 = vld [vmem:[#allocation3] sm:$0x1]
          %v1214 = vmul.f32 %v1173, %v1173
          %v1215 = vmul.f32 %v1174, %v1174
          %v1216 = vmul.f32 %v1175, %v1175
          %v1217 = vmul.f32 %v1176, %v1176
          %v1218 = vmul.f32 %v1177, %v1177
          %v1219 = vmul.f32 %v1178, %v1178
          %v1220 = vmul.f32 %v1179, %v1179
          %v1221 = vmul.f32 %v1180, %v1180
          %v1222 = vmul.f32 %v1181, %v1181
          %v1223 = vmul.f32 %v1182, %v1182
          %v1224 = vmul.f32 %v1183, %v1183
          %v1225 = vmul.f32 %v1184, %v1184
          %v1226 = vmul.f32 %v1185, %v1185
          %v1227 = vmul.f32 %v1186, %v1186
          %v1228 = vmul.f32 %v1187, %v1187
          %v1229 = vmul.f32 %v1188, %v1188
          %v1230 = vadd.f32 %v1214, %v1215
          %v1231 = vadd.f32 %v1230, %v1216
          %v1232 = vadd.f32 %v1231, %v1217
          %v1233 = vadd.f32 %v1232, %v1218
          %v1234 = vadd.f32 %v1233, %v1219
          %v1235 = vadd.f32 %v1234, %v1220
          %v1236 = vadd.f32 %v1235, %v1221
          %v1237 = vadd.f32 %v1236, %v1222
          %v1238 = vadd.f32 %v1237, %v1223
          %v1239 = vadd.f32 %v1238, %v1224
          %v1240 = vadd.f32 %v1239, %v1225
          %v1241 = vadd.f32 %v1240, %v1226
          %v1242 = vadd.f32 %v1241, %v1227
          %v1243 = vadd.f32 %v1242, %v1228
          %v1244 = vadd.f32 %v1243, %v1229
          %v1245 = vrot.slane %v1244, 4
          %v1246 = vadd.f32 %v1244, %v1245
          %v1247 = vrot.slane %v1246, 2
          %v1248 = vadd.f32 %v1246, %v1247
          %v1249 = vrot.slane %v1248, 1
          %v1250 = vadd.f32 %v1248, %v1249
          %v1251 = vadd.f32 %v1213, %v1250
          %1252 = vst [vmem:[#allocation3] sm:$0x1] %v1251
        $region84: #{tpu_custom_call.1} parent=67 // pred_fallthru
          _
        %p1253 = scmp.eq.s32.totalorder %s30, 1
        // Predicated region
        $region85: #{tpu_custom_call.1} parent=67 // pred_check
          %p1254 = pneg %p1253
        $region86: #{tpu_custom_call.1} parent=67 // pred_check_branch
          %1256 = sbr.rel (%p1254) target = $region88
        $region87: #{tpu_custom_call.1} parent=67 // pred_region
          %v1257 = vld [vmem:[#allocation2] sm:$0x1]
          %v1258 = vmul.f32 %v1257, 0.005
          %v1259 = vld [vmem:[#allocation3] sm:$0x1]
          %v1260 = vmul.f32 %v1259, 0.005
          %v1261 = vmul.f32 %v1258, %v1258
          %v1262 = vsub.f32 %v1260, %v1261
          %v1264 = vlaneseq
          %v1265 = vshrl.u32 %v1264, 7
          %v1266 = vsub.s32 0, %v1265
          %v1267 = vrot.slane %v1258, %v1266
          %v1269 = vsub.f32 %v1025, %v1267
          %v1270 = vsub.f32 %v1028, %v1267
          %v1271 = vsub.f32 %v1033, %v1267
          %v1272 = vsub.f32 %v1036, %v1267
          %v1273 = vsub.f32 %v1041, %v1267
          %v1274 = vsub.f32 %v1044, %v1267
          %v1275 = vsub.f32 %v1049, %v1267
          %v1276 = vsub.f32 %v1052, %v1267
          %v1277 = vsub.f32 %v1057, %v1267
          %v1278 = vsub.f32 %v1060, %v1267
          %v1279 = vsub.f32 %v1065, %v1267
          %v1280 = vsub.f32 %v1068, %v1267
          %v1281 = vsub.f32 %v1073, %v1267
          %v1282 = vsub.f32 %v1076, %v1267
          %v1283 = vsub.f32 %v1081, %v1267
          %v1284 = vsub.f32 %v1084, %v1267
          %v1285 = vadd.f32 %v1262, 1e-05
          %v1286 = vrsqrt.pop %v1285
          %v1288 = vlaneseq
          %v1289 = vshrl.u32 %v1288, 7
          %v1290 = vsub.s32 0, %v1289
          %v1291 = vrot.slane %v1286, %v1290
          %v1293 = vmul.f32 %v1269, %v1291
          %v1294 = vmul.f32 %v1270, %v1291
          %v1295 = vmul.f32 %v1271, %v1291
          %v1296 = vmul.f32 %v1272, %v1291
          %v1297 = vmul.f32 %v1273, %v1291
          %v1298 = vmul.f32 %v1274, %v1291
          %v1299 = vmul.f32 %v1275, %v1291
          %v1300 = vmul.f32 %v1276, %v1291
          %v1301 = vmul.f32 %v1277, %v1291
          %v1302 = vmul.f32 %v1278, %v1291
          %v1303 = vmul.f32 %v1279, %v1291
          %v1304 = vmul.f32 %v1280, %v1291
          %v1305 = vmul.f32 %v1281, %v1291
          %v1306 = vmul.f32 %v1282, %v1291
          %v1307 = vmul.f32 %v1283, %v1291
          %v1308 = vmul.f32 %v1284, %v1291
          %v1309 = vld [vmem:[%s6] sm:$0x1]
          %v1311 = vlaneseq
          %v1312 = vshrl.u32 %v1311, 7
          %v1313 = vsub.s32 0, %v1312
          %v1314 = vrot.slane %v1309, %v1313
          %v1316 = vmul.f32 %v1293, %v1314
          %v1317 = vmul.f32 %v1294, %v1314
          %v1318 = vmul.f32 %v1295, %v1314
          %v1319 = vmul.f32 %v1296, %v1314
          %v1320 = vmul.f32 %v1297, %v1314
          %v1321 = vmul.f32 %v1298, %v1314
          %v1322 = vmul.f32 %v1299, %v1314
          %v1323 = vmul.f32 %v1300, %v1314
          %v1324 = vmul.f32 %v1301, %v1314
          %v1325 = vmul.f32 %v1302, %v1314
          %v1326 = vmul.f32 %v1303, %v1314
          %v1327 = vmul.f32 %v1304, %v1314
          %v1328 = vmul.f32 %v1305, %v1314
          %v1329 = vmul.f32 %v1306, %v1314
          %v1330 = vmul.f32 %v1307, %v1314
          %v1331 = vmul.f32 %v1308, %v1314
          %v1332 = vld [vmem:[%s7] sm:$0x1]
          %v1334 = vlaneseq
          %v1335 = vshrl.u32 %v1334, 7
          %v1336 = vsub.s32 0, %v1335
          %v1337 = vrot.slane %v1332, %v1336
          %v1339 = vadd.f32 %v1316, %v1337
          %v1340 = vadd.f32 %v1317, %v1337
          %v1341 = vadd.f32 %v1318, %v1337
          %v1342 = vadd.f32 %v1319, %v1337
          %v1343 = vadd.f32 %v1320, %v1337
          %v1344 = vadd.f32 %v1321, %v1337
          %v1345 = vadd.f32 %v1322, %v1337
          %v1346 = vadd.f32 %v1323, %v1337
          %v1347 = vadd.f32 %v1324, %v1337
          %v1348 = vadd.f32 %v1325, %v1337
          %v1349 = vadd.f32 %v1326, %v1337
          %v1350 = vadd.f32 %v1327, %v1337
          %v1351 = vadd.f32 %v1328, %v1337
          %v1352 = vadd.f32 %v1329, %v1337
          %v1353 = vadd.f32 %v1330, %v1337
          %v1354 = vadd.f32 %v1331, %v1337
          %vm1355 = vcmp.gt.f32.partialorder %v1339, 0.0
          %vm1356 = vcmp.gt.f32.partialorder %v1340, 0.0
          %vm1357 = vcmp.gt.f32.partialorder %v1341, 0.0
          %vm1358 = vcmp.gt.f32.partialorder %v1342, 0.0
          %vm1359 = vcmp.gt.f32.partialorder %v1343, 0.0
          %vm1360 = vcmp.gt.f32.partialorder %v1344, 0.0
          %vm1361 = vcmp.gt.f32.partialorder %v1345, 0.0
          %vm1362 = vcmp.gt.f32.partialorder %v1346, 0.0
          %vm1363 = vcmp.gt.f32.partialorder %v1347, 0.0
          %vm1364 = vcmp.gt.f32.partialorder %v1348, 0.0
          %vm1365 = vcmp.gt.f32.partialorder %v1349, 0.0
          %vm1366 = vcmp.gt.f32.partialorder %v1350, 0.0
          %vm1367 = vcmp.gt.f32.partialorder %v1351, 0.0
          %vm1368 = vcmp.gt.f32.partialorder %v1352, 0.0
          %vm1369 = vcmp.gt.f32.partialorder %v1353, 0.0
          %vm1370 = vcmp.gt.f32.partialorder %v1354, 0.0
          %v1371 = vmin.f32 %v1339, 0.0
          %v1372 = vmin.f32 %v1340, 0.0
          %v1373 = vmin.f32 %v1341, 0.0
          %v1374 = vmin.f32 %v1342, 0.0
          %v1375 = vmin.f32 %v1343, 0.0
          %v1376 = vmin.f32 %v1344, 0.0
          %v1377 = vmin.f32 %v1345, 0.0
          %v1378 = vmin.f32 %v1346, 0.0
          %v1379 = vmin.f32 %v1347, 0.0
          %v1380 = vmin.f32 %v1348, 0.0
          %v1381 = vmin.f32 %v1349, 0.0
          %v1382 = vmin.f32 %v1350, 0.0
          %v1383 = vmin.f32 %v1351, 0.0
          %v1384 = vmin.f32 %v1352, 0.0
          %v1385 = vmin.f32 %v1353, 0.0
          %v1386 = vmin.f32 %v1354, 0.0
          %v1387 = vmul.f32 %v1371, 1.442695
          %v1388 = vpow.pop %v1387
          %v1389 = vmul.f32 %v1372, 1.442695
          %v1390 = vpow.pop %v1389
          %v1391 = vmul.f32 %v1373, 1.442695
          %v1392 = vpow.pop %v1391
          %v1393 = vmul.f32 %v1374, 1.442695
          %v1394 = vpow.pop %v1393
          %v1395 = vmul.f32 %v1375, 1.442695
          %v1396 = vpow.pop %v1395
          %v1397 = vmul.f32 %v1376, 1.442695
          %v1398 = vpow.pop %v1397
          %v1399 = vmul.f32 %v1377, 1.442695
          %v1400 = vpow.pop %v1399
          %v1401 = vmul.f32 %v1378, 1.442695
          %v1402 = vpow.pop %v1401
          %v1403 = vmul.f32 %v1379, 1.442695
          %v1404 = vpow.pop %v1403
          %v1405 = vmul.f32 %v1380, 1.442695
          %v1406 = vpow.pop %v1405
          %v1407 = vmul.f32 %v1381, 1.442695
          %v1408 = vpow.pop %v1407
          %v1409 = vmul.f32 %v1382, 1.442695
          %v1410 = vpow.pop %v1409
          %v1411 = vmul.f32 %v1383, 1.442695
          %v1412 = vpow.pop %v1411
          %v1413 = vmul.f32 %v1384, 1.442695
          %v1414 = vpow.pop %v1413
          %v1415 = vmul.f32 %v1385, 1.442695
          %v1416 = vpow.pop %v1415
          %v1417 = vmul.f32 %v1386, 1.442695
          %v1418 = vpow.pop %v1417
          %v1419 = vsub.f32 %v1388, 1.0
          %v1420 = vsub.f32 %v1390, 1.0
          %v1421 = vsub.f32 %v1392, 1.0
          %v1422 = vsub.f32 %v1394, 1.0
          %v1423 = vsub.f32 %v1396, 1.0
          %v1424 = vsub.f32 %v1398, 1.0
          %v1425 = vsub.f32 %v1400, 1.0
          %v1426 = vsub.f32 %v1402, 1.0
          %v1427 = vsub.f32 %v1404, 1.0
          %v1428 = vsub.f32 %v1406, 1.0
          %v1429 = vsub.f32 %v1408, 1.0
          %v1430 = vsub.f32 %v1410, 1.0
          %v1431 = vsub.f32 %v1412, 1.0
          %v1432 = vsub.f32 %v1414, 1.0
          %v1433 = vsub.f32 %v1416, 1.0
          %v1434 = vsub.f32 %v1418, 1.0
          %v1435 = vsel %vm1355, %v1339, %v1419
          %v1436 = vsel %vm1356, %v1340, %v1420
          %v1437 = vsel %vm1357, %v1341, %v1421
          %v1438 = vsel %vm1358, %v1342, %v1422
          %v1439 = vsel %vm1359, %v1343, %v1423
          %v1440 = vsel %vm1360, %v1344, %v1424
          %v1441 = vsel %vm1361, %v1345, %v1425
          %v1442 = vsel %vm1362, %v1346, %v1426
          %v1443 = vsel %vm1363, %v1347, %v1427
          %v1444 = vsel %vm1364, %v1348, %v1428
          %v1445 = vsel %vm1365, %v1349, %v1429
          %v1446 = vsel %vm1366, %v1350, %v1430
          %v1447 = vsel %vm1367, %v1351, %v1431
          %v1448 = vsel %vm1368, %v1352, %v1432
          %v1449 = vsel %vm1369, %v1353, %v1433
          %v1450 = vsel %vm1370, %v1354, %v1434
          %v1451 = vld [vmem:[%s473] sm:$0x1]
          %v1452 = vlaneseq
          %v1453 = vshrl.u32 %v1452, 7
          %v1454 = vsub.s32 0, %v1453
          %v1455 = vrot.slane %v1451, %v1454
          %vm1456 = vcmp.eq.s32.totalorder %v1088, %v1455
          %vm1457 = vcmp.eq.s32.totalorder %v1089, %v1455
          %vm1458 = vcmp.eq.s32.totalorder %v1090, %v1455
          %vm1459 = vcmp.eq.s32.totalorder %v1091, %v1455
          %vm1460 = vcmp.eq.s32.totalorder %v1092, %v1455
          %vm1461 = vcmp.eq.s32.totalorder %v1093, %v1455
          %vm1462 = vcmp.eq.s32.totalorder %v1094, %v1455
          %vm1463 = vcmp.eq.s32.totalorder %v1095, %v1455
          %v1464 = vsel %vm1456, 1, 0
          %v1465 = vsel %vm1457, 1, 0
          %v1466 = vsel %vm1458, 1, 0
          %v1467 = vsel %vm1459, 1, 0
          %v1468 = vsel %vm1460, 1, 0
          %v1469 = vsel %vm1461, 1, 0
          %v1470 = vsel %vm1462, 1, 0
          %v1471 = vsel %vm1463, 1, 0
          %v1472 = vcvt.s32.f32 %v1464
          %v1473 = vcvt.s32.f32 %v1465
          %v1474 = vcvt.s32.f32 %v1466
          %v1475 = vcvt.s32.f32 %v1467
          %v1476 = vcvt.s32.f32 %v1468
          %v1477 = vcvt.s32.f32 %v1469
          %v1478 = vcvt.s32.f32 %v1470
          %v1479 = vcvt.s32.f32 %v1471
          %v1480 = vpack.c.bf16 %v1473, %v1472
          %v1481 = vpack.c.bf16 %v1475, %v1474
          %v1482 = vpack.c.bf16 %v1477, %v1476
          %v1483 = vpack.c.bf16 %v1479, %v1478
          %v1484 = vld [vmem:[#allocation4] sm:$0xff]
          %v1485 = vld [vmem:[#allocation4 + $0x8] sm:$0xff]
          %v1486 = vld [vmem:[#allocation4 + $0x10] sm:$0xff]
          %v1487 = vld [vmem:[#allocation4 + $0x18] sm:$0xff]
          %v1488 = vld [vmem:[#allocation4 + $0x20] sm:$0xff]
          %v1489 = vld [vmem:[#allocation4 + $0x28] sm:$0xff]
          %v1490 = vld [vmem:[#allocation4 + $0x30] sm:$0xff]
          %v1491 = vld [vmem:[#allocation4 + $0x38] sm:$0xff]
          %v1492 = vpack.c.bf16 %v1436, %v1435
          %v1493 = vpack.c.bf16 %v1438, %v1437
          %v1494 = vpack.c.bf16 %v1440, %v1439
          %v1495 = vpack.c.bf16 %v1442, %v1441
          %v1496 = vpack.c.bf16 %v1444, %v1443
          %v1497 = vpack.c.bf16 %v1446, %v1445
          %v1498 = vpack.c.bf16 %v1448, %v1447
          %v1499 = vpack.c.bf16 %v1450, %v1449
          %1500 = vmatprep.subr.bf16.mxu0 0
          %1501 = vmatpush1.bf16.msra.mxu0 %v1499
          %1502 = vmatprep.subr.bf16.mxu0 0
          %1503 = vmatpush1.bf16.msra.mxu0 %v1498
          %1504 = vmatprep.subr.bf16.mxu0 0
          %1505 = vmatpush1.bf16.msra.mxu0 %v1497
          %1506 = vmatprep.subr.bf16.mxu0 0
          %1507 = vmatpush1.bf16.msra.mxu0 %v1496
          %1508 = vmatprep.subr.bf16.mxu0 0
          %1509 = vmatpush1.bf16.msra.mxu0 %v1495
          %1510 = vmatprep.subr.bf16.mxu0 0
          %1511 = vmatpush1.bf16.msra.mxu0 %v1494
          %1512 = vmatprep.subr.bf16.mxu0 0
          %1513 = vmatpush1.bf16.msra.mxu0 %v1493
          %1514 = vmatprep.subr.bf16.mxu0 0
          %1515 = vmatpush1.bf16.msra.mxu0 %v1492
          %1516 = vmatprep.subr.bf16.mxu0 0
          %1517 = vmatpush2.bf16.msra.mxu0 0
          %1518 = vmatprep.subr.bf16.mxu0 0
          %1519 = vmatpush2.bf16.msra.mxu0 0
          %1520 = vmatprep.subr.bf16.mxu0 0
          %1521 = vmatpush2.bf16.msra.mxu0 0
          %1522 = vmatprep.subr.bf16.mxu0 0
          %1523 = vmatpush2.bf16.msra.mxu0 0
          %1524 = vmatprep.subr.bf16.mxu0 0
          %1525 = vmatpush2.bf16.msra.mxu0 0
          %1526 = vmatprep.subr.bf16.mxu0 0
          %1527 = vmatpush2.bf16.msra.mxu0 0
          %1528 = vmatprep.subr.bf16.mxu0 0
          %1529 = vmatpush2.bf16.msra.mxu0 0
          %1530 = vmatprep.subr.bf16.mxu0 0
          %1531 = vmatpush2.bf16.msra.mxu0 0
          %1532 = vmatprep.mubr.bf16.mxu0 0
          %1533 = vmatmul.mubr.bf16.gmra.mxu0 %v1480
          %v1534 = vpop.f32.mrf.mxu0
          %v1535 = vadd.f32 0.0, %v1534
          %v1536 = vpop.f32.mrf.mxu0
          %v1537 = vpop.f32.mrf.mxu0
          %v1538 = vadd.f32 0.0, %v1537
          %v1539 = vpop.f32.mrf.mxu0
          %1540 = vmatprep.mubr.bf16.mxu0 0
          %1541 = vmatmul.mubr.bf16.gmra.mxu0 %v1481
          %v1542 = vpop.f32.mrf.mxu0
          %v1543 = vadd.f32 0.0, %v1542
          %v1544 = vpop.f32.mrf.mxu0
          %v1545 = vpop.f32.mrf.mxu0
          %v1546 = vadd.f32 0.0, %v1545
          %v1547 = vpop.f32.mrf.mxu0
          %1548 = vmatprep.mubr.bf16.mxu0 0
          %1549 = vmatmul.mubr.bf16.gmra.mxu0 %v1482
          %v1550 = vpop.f32.mrf.mxu0
          %v1551 = vadd.f32 0.0, %v1550
          %v1552 = vpop.f32.mrf.mxu0
          %v1553 = vpop.f32.mrf.mxu0
          %v1554 = vadd.f32 0.0, %v1553
          %v1555 = vpop.f32.mrf.mxu0
          %1556 = vmatprep.mubr.bf16.mxu0 0
          %1557 = vmatmul.mubr.bf16.gmra.mxu0 %v1483
          %v1558 = vpop.f32.mrf.mxu0
          %v1559 = vadd.f32 0.0, %v1558
          %v1560 = vpop.f32.mrf.mxu0
          %v1561 = vpop.f32.mrf.mxu0
          %v1562 = vadd.f32 0.0, %v1561
          %v1563 = vpop.f32.mrf.mxu0
          %1564 = vdwg.mxu0
          %v1565 = vadd.f32 %v1484, %v1535
          %v1566 = vadd.f32 %v1485, %v1538
          %v1567 = vadd.f32 %v1486, %v1543
          %v1568 = vadd.f32 %v1487, %v1546
          %v1569 = vadd.f32 %v1488, %v1551
          %v1570 = vadd.f32 %v1489, %v1554
          %v1571 = vadd.f32 %v1490, %v1559
          %v1572 = vadd.f32 %v1491, %v1562
          %1573 = vst [vmem:[#allocation4] sm:$0xff] %v1565
          %1574 = vst [vmem:[#allocation4 + $0x8] sm:$0xff] %v1566
          %1575 = vst [vmem:[#allocation4 + $0x10] sm:$0xff] %v1567
          %1576 = vst [vmem:[#allocation4 + $0x18] sm:$0xff] %v1568
          %1577 = vst [vmem:[#allocation4 + $0x20] sm:$0xff] %v1569
          %1578 = vst [vmem:[#allocation4 + $0x28] sm:$0xff] %v1570
          %1579 = vst [vmem:[#allocation4 + $0x30] sm:$0xff] %v1571
          %1580 = vst [vmem:[#allocation4 + $0x38] sm:$0xff] %v1572
          %v1581 = vld [vmem:[#allocation5] sm:$0xff]
          %v1582 = vld [vmem:[#allocation5 + $0x8] sm:$0xff]
          %v1583 = vld [vmem:[#allocation5 + $0x10] sm:$0xff]
          %v1584 = vld [vmem:[#allocation5 + $0x18] sm:$0xff]
          %v1585 = vld [vmem:[#allocation5 + $0x20] sm:$0xff]
          %v1586 = vld [vmem:[#allocation5 + $0x28] sm:$0xff]
          %v1587 = vld [vmem:[#allocation5 + $0x30] sm:$0xff]
          %v1588 = vld [vmem:[#allocation5 + $0x38] sm:$0xff]
          %1589 = vmatprep.subr.bf16.mxu0 0
          %1590 = vmatpush1.bf16.msra.mxu0 1065369472
          %1591 = vmatprep.subr.bf16.mxu0 0
          %1592 = vmatpush1.bf16.msra.mxu0 1065369472
          %1593 = vmatprep.subr.bf16.mxu0 0
          %1594 = vmatpush1.bf16.msra.mxu0 1065369472
          %1595 = vmatprep.subr.bf16.mxu0 0
          %1596 = vmatpush1.bf16.msra.mxu0 1065369472
          %1597 = vmatprep.subr.bf16.mxu0 0
          %1598 = vmatpush1.bf16.msra.mxu0 1065369472
          %1599 = vmatprep.subr.bf16.mxu0 0
          %1600 = vmatpush1.bf16.msra.mxu0 1065369472
          %1601 = vmatprep.subr.bf16.mxu0 0
          %1602 = vmatpush1.bf16.msra.mxu0 1065369472
          %1603 = vmatprep.subr.bf16.mxu0 0
          %1604 = vmatpush1.bf16.msra.mxu0 1065369472
          %1605 = vmatprep.subr.bf16.mxu0 0
          %1606 = vmatpush2.bf16.msra.mxu0 0
          %1607 = vmatprep.subr.bf16.mxu0 0
          %1608 = vmatpush2.bf16.msra.mxu0 0
          %1609 = vmatprep.subr.bf16.mxu0 0
          %1610 = vmatpush2.bf16.msra.mxu0 0
          %1611 = vmatprep.subr.bf16.mxu0 0
          %1612 = vmatpush2.bf16.msra.mxu0 0
          %1613 = vmatprep.subr.bf16.mxu0 0
          %1614 = vmatpush2.bf16.msra.mxu0 0
          %1615 = vmatprep.subr.bf16.mxu0 0
          %1616 = vmatpush2.bf16.msra.mxu0 0
          %1617 = vmatprep.subr.bf16.mxu0 0
          %1618 = vmatpush2.bf16.msra.mxu0 0
          %1619 = vmatprep.subr.bf16.mxu0 0
          %1620 = vmatpush2.bf16.msra.mxu0 0
          %1621 = vmatprep.mubr.bf16.mxu0 0
          %1622 = vmatmul.mubr.bf16.gmra.mxu0 %v1480
          %v1623 = vpop.f32.mrf.mxu0
          %v1624 = vadd.f32 0.0, %v1623
          %v1625 = vpop.f32.mrf.mxu0
          %v1626 = vpop.f32.mrf.mxu0
          %v1627 = vadd.f32 0.0, %v1626
          %v1628 = vpop.f32.mrf.mxu0
          %1629 = vmatprep.mubr.bf16.mxu0 0
          %1630 = vmatmul.mubr.bf16.gmra.mxu0 %v1481
          %v1631 = vpop.f32.mrf.mxu0
          %v1632 = vadd.f32 0.0, %v1631
          %v1633 = vpop.f32.mrf.mxu0
          %v1634 = vpop.f32.mrf.mxu0
          %v1635 = vadd.f32 0.0, %v1634
          %v1636 = vpop.f32.mrf.mxu0
          %1637 = vmatprep.mubr.bf16.mxu0 0
          %1638 = vmatmul.mubr.bf16.gmra.mxu0 %v1482
          %v1639 = vpop.f32.mrf.mxu0
          %v1640 = vadd.f32 0.0, %v1639
          %v1641 = vpop.f32.mrf.mxu0
          %v1642 = vpop.f32.mrf.mxu0
          %v1643 = vadd.f32 0.0, %v1642
          %v1644 = vpop.f32.mrf.mxu0
          %1645 = vmatprep.mubr.bf16.mxu0 0
          %1646 = vmatmul.mubr.bf16.gmra.mxu0 %v1483
          %v1647 = vpop.f32.mrf.mxu0
          %v1648 = vadd.f32 0.0, %v1647
          %v1649 = vpop.f32.mrf.mxu0
          %v1650 = vpop.f32.mrf.mxu0
          %v1651 = vadd.f32 0.0, %v1650
          %v1652 = vpop.f32.mrf.mxu0
          %1653 = vdwg.mxu0
          %v1654 = vadd.f32 %v1581, %v1624
          %v1655 = vadd.f32 %v1582, %v1627
          %v1656 = vadd.f32 %v1583, %v1632
          %v1657 = vadd.f32 %v1584, %v1635
          %v1658 = vadd.f32 %v1585, %v1640
          %v1659 = vadd.f32 %v1586, %v1643
          %v1660 = vadd.f32 %v1587, %v1648
          %v1661 = vadd.f32 %v1588, %v1651
          %vm1662 = vcmask 7168
          %1663 = vst.msk [vmem:[#allocation5] sm:$0xff] %vm1662, %v1654
          %1664 = vst.msk [vmem:[#allocation5 + $0x8] sm:$0xff] %vm1662, %v1655
          %1665 = vst.msk [vmem:[#allocation5 + $0x10] sm:$0xff] %vm1662, %v1656
          %1666 = vst.msk [vmem:[#allocation5 + $0x18] sm:$0xff] %vm1662, %v1657
          %1667 = vst.msk [vmem:[#allocation5 + $0x20] sm:$0xff] %vm1662, %v1658
          %1668 = vst.msk [vmem:[#allocation5 + $0x28] sm:$0xff] %vm1662, %v1659
          %1669 = vst.msk [vmem:[#allocation5 + $0x30] sm:$0xff] %vm1662, %v1660
          %1670 = vst.msk [vmem:[#allocation5 + $0x38] sm:$0xff] %vm1662, %v1661
        $region88: #{tpu_custom_call.1} parent=67 // pred_fallthru
          _
        %p1671 = scmp.eq.s32.totalorder %s31, 1
        %p1672 = pnand %p1253, %p1671
        %p1673 = pneg %p1672
        // Predicated region
        $region89: #{tpu_custom_call.1} parent=67 // pred_check
          _
        $region90: #{tpu_custom_call.1} parent=67 // pred_check_branch
          %1675 = sbr.rel (%p1672) target = $region92
        $region91: #{tpu_custom_call.1} parent=67 // pred_region
          %v1676 = vld [vmem:[#allocation5] sm:$0xff]
          %v1677 = vld [vmem:[#allocation5 + $0x8] sm:$0xff]
          %v1678 = vld [vmem:[#allocation5 + $0x10] sm:$0xff]
          %v1679 = vld [vmem:[#allocation5 + $0x18] sm:$0xff]
          %v1680 = vld [vmem:[#allocation5 + $0x20] sm:$0xff]
          %v1681 = vld [vmem:[#allocation5 + $0x28] sm:$0xff]
          %v1682 = vld [vmem:[#allocation5 + $0x30] sm:$0xff]
          %v1683 = vld [vmem:[#allocation5 + $0x38] sm:$0xff]
          %v1684 = vmax.f32 %v1676, 1.0
          %v1685 = vmax.f32 %v1677, 1.0
          %v1686 = vmax.f32 %v1678, 1.0
          %v1687 = vmax.f32 %v1679, 1.0
          %v1688 = vmax.f32 %v1680, 1.0
          %v1689 = vmax.f32 %v1681, 1.0
          %v1690 = vmax.f32 %v1682, 1.0
          %v1691 = vmax.f32 %v1683, 1.0
          %v1692 = vrcp.pop %v1684
          %v1693 = vrcp.pop %v1685
          %v1694 = vrcp.pop %v1686
          %v1695 = vrcp.pop %v1687
          %v1696 = vrcp.pop %v1688
          %v1697 = vrcp.pop %v1689
          %v1698 = vrcp.pop %v1690
          %v1699 = vrcp.pop %v1691
          %v1700 = vld [vmem:[#allocation4] sm:$0xff]
          %v1701 = vld [vmem:[#allocation4 + $0x8] sm:$0xff]
          %v1702 = vld [vmem:[#allocation4 + $0x10] sm:$0xff]
          %v1703 = vld [vmem:[#allocation4 + $0x18] sm:$0xff]
          %v1704 = vld [vmem:[#allocation4 + $0x20] sm:$0xff]
          %v1705 = vld [vmem:[#allocation4 + $0x28] sm:$0xff]
          %v1706 = vld [vmem:[#allocation4 + $0x30] sm:$0xff]
          %v1707 = vld [vmem:[#allocation4 + $0x38] sm:$0xff]
          %1709 = vset.pattern.permute.xlu0 0
          %1710 = vperm.xlu0 %1709, %v1692
          %v1711 = vpop.permute.xlu0 %1710
          %1714 = vset.pattern.permute.xlu0 0
          %1715 = vperm.xlu0 %1714, %v1693
          %v1716 = vpop.permute.xlu0 %1715
          %1719 = vset.pattern.permute.xlu0 0
          %1720 = vperm.xlu0 %1719, %v1694
          %v1721 = vpop.permute.xlu0 %1720
          %1724 = vset.pattern.permute.xlu0 0
          %1725 = vperm.xlu0 %1724, %v1695
          %v1726 = vpop.permute.xlu0 %1725
          %1729 = vset.pattern.permute.xlu0 0
          %1730 = vperm.xlu0 %1729, %v1696
          %v1731 = vpop.permute.xlu0 %1730
          %1734 = vset.pattern.permute.xlu0 0
          %1735 = vperm.xlu0 %1734, %v1697
          %v1736 = vpop.permute.xlu0 %1735
          %1739 = vset.pattern.permute.xlu0 0
          %1740 = vperm.xlu0 %1739, %v1698
          %v1741 = vpop.permute.xlu0 %1740
          %1744 = vset.pattern.permute.xlu0 0
          %1745 = vperm.xlu0 %1744, %v1699
          %v1746 = vpop.permute.xlu0 %1745
          %v1748 = vmul.f32 %v1700, %v1711
          %v1749 = vmul.f32 %v1701, %v1716
          %v1750 = vmul.f32 %v1702, %v1721
          %v1751 = vmul.f32 %v1703, %v1726
          %v1752 = vmul.f32 %v1704, %v1731
          %v1753 = vmul.f32 %v1705, %v1736
          %v1754 = vmul.f32 %v1706, %v1741
          %v1755 = vmul.f32 %v1707, %v1746
          %v1756 = vld [vmem:[#allocation6] sm:$0xf]
          %v1757 = vld [vmem:[#allocation6 + $0x4] sm:$0xf]
          %v1758 = vld [vmem:[#allocation6 + $0x8] sm:$0xf]
          %v1759 = vld [vmem:[#allocation6 + $0xc] sm:$0xf]
          %v1760 = vld [vmem:[#allocation6 + $0x10] sm:$0xf]
          %v1761 = vld [vmem:[#allocation6 + $0x14] sm:$0xf]
          %v1762 = vld [vmem:[#allocation6 + $0x18] sm:$0xf]
          %v1763 = vld [vmem:[#allocation6 + $0x1c] sm:$0xf]
          %v1764 = vpack.c.bf16 %v1749, %v1748
          %v1765 = vpack.c.bf16 %v1751, %v1750
          %v1766 = vpack.c.bf16 %v1753, %v1752
          %v1767 = vpack.c.bf16 %v1755, %v1754
          %v1776 = vunpack.c.l.b16 %v1756
          %v1777 = vunpack.c.l.b16 %v1757
          %v1778 = vunpack.c.l.b16 %v1758
          %v1779 = vunpack.c.l.b16 %v1759
          %v1780 = vunpack.c.l.b16 %v1760
          %v1781 = vunpack.c.l.b16 %v1761
          %v1782 = vunpack.c.l.b16 %v1762
          %v1783 = vunpack.c.l.b16 %v1763
          %v1784 = vpack.c.b16 %v1777, %v1776
          %v1785 = vpack.c.b16 %v1779, %v1778
          %v1786 = vpack.c.b16 %v1781, %v1780
          %v1787 = vpack.c.b16 %v1783, %v1782
          %v1792 = vld [vmem:[#allocation9] sm:$0xf]
          %v1793 = vld [vmem:[#allocation9 + $0x4] sm:$0xf]
          %v1794 = vld [vmem:[#allocation9 + $0x8] sm:$0xf]
          %v1795 = vld [vmem:[#allocation9 + $0xc] sm:$0xf]
          %v1796 = vld [vmem:[#allocation9 + $0x10] sm:$0xf]
          %v1797 = vld [vmem:[#allocation9 + $0x14] sm:$0xf]
          %v1798 = vld [vmem:[#allocation9 + $0x18] sm:$0xf]
          %v1799 = vld [vmem:[#allocation9 + $0x1c] sm:$0xf]
          %v1800 = vld [vmem:[#allocation9 + $0x20] sm:$0xf]
          %v1801 = vld [vmem:[#allocation9 + $0x24] sm:$0xf]
          %v1802 = vld [vmem:[#allocation9 + $0x28] sm:$0xf]
          %v1803 = vld [vmem:[#allocation9 + $0x2c] sm:$0xf]
          %v1804 = vld [vmem:[#allocation9 + $0x30] sm:$0xf]
          %v1805 = vld [vmem:[#allocation9 + $0x34] sm:$0xf]
          %v1806 = vld [vmem:[#allocation9 + $0x38] sm:$0xf]
          %v1807 = vld [vmem:[#allocation9 + $0x3c] sm:$0xf]
          %v1808 = vld [vmem:[#allocation9 + $0x40] sm:$0xf]
          %v1809 = vld [vmem:[#allocation9 + $0x44] sm:$0xf]
          %v1810 = vld [vmem:[#allocation9 + $0x48] sm:$0xf]
          %v1811 = vld [vmem:[#allocation9 + $0x4c] sm:$0xf]
          %v1812 = vld [vmem:[#allocation9 + $0x50] sm:$0xf]
          %v1813 = vld [vmem:[#allocation9 + $0x54] sm:$0xf]
          %v1814 = vld [vmem:[#allocation9 + $0x58] sm:$0xf]
          %v1815 = vld [vmem:[#allocation9 + $0x5c] sm:$0xf]
          %v1816 = vld [vmem:[#allocation9 + $0x60] sm:$0xf]
          %v1817 = vld [vmem:[#allocation9 + $0x64] sm:$0xf]
          %v1818 = vld [vmem:[#allocation9 + $0x68] sm:$0xf]
          %v1819 = vld [vmem:[#allocation9 + $0x6c] sm:$0xf]
          %v1820 = vld [vmem:[#allocation9 + $0x70] sm:$0xf]
          %v1821 = vld [vmem:[#allocation9 + $0x74] sm:$0xf]
          %v1822 = vld [vmem:[#allocation9 + $0x78] sm:$0xf]
          %v1823 = vld [vmem:[#allocation9 + $0x7c] sm:$0xf]
          %v1824 = vld [vmem:[%s9] sm:$0x1]
          %v1826 = vlaneseq
          %v1827 = vshrl.u32 %v1826, 7
          %v1828 = vsub.s32 0, %v1827
          %v1829 = vrot.slane %v1824, %v1828
          %v1863 = vunpack.c.l.b16 %v1792
          %v1864 = vunpack.c.l.b16 %v1793
          %v1865 = vunpack.c.l.b16 %v1794
          %v1866 = vunpack.c.l.b16 %v1795
          %v1867 = vunpack.c.l.b16 %v1796
          %v1868 = vunpack.c.l.b16 %v1797
          %v1869 = vunpack.c.l.b16 %v1798
          %v1870 = vunpack.c.l.b16 %v1799
          %v1871 = vunpack.c.l.b16 %v1800
          %v1872 = vunpack.c.l.b16 %v1801
          %v1873 = vunpack.c.l.b16 %v1802
          %v1874 = vunpack.c.l.b16 %v1803
          %v1875 = vunpack.c.l.b16 %v1804
          %v1876 = vunpack.c.l.b16 %v1805
          %v1877 = vunpack.c.l.b16 %v1806
          %v1878 = vunpack.c.l.b16 %v1807
          %v1879 = vunpack.c.l.b16 %v1808
          %v1880 = vunpack.c.l.b16 %v1809
          %v1881 = vunpack.c.l.b16 %v1810
          %v1882 = vunpack.c.l.b16 %v1811
          %v1883 = vunpack.c.l.b16 %v1812
          %v1884 = vunpack.c.l.b16 %v1813
          %v1885 = vunpack.c.l.b16 %v1814
          %v1886 = vunpack.c.l.b16 %v1815
          %v1887 = vunpack.c.l.b16 %v1816
          %v1888 = vunpack.c.l.b16 %v1817
          %v1889 = vunpack.c.l.b16 %v1818
          %v1890 = vunpack.c.l.b16 %v1819
          %v1891 = vunpack.c.l.b16 %v1820
          %v1892 = vunpack.c.l.b16 %v1821
          %v1893 = vunpack.c.l.b16 %v1822
          %v1894 = vunpack.c.l.b16 %v1823
          %v1895 = vpack.c.b16 %v1864, %v1863
          %v1896 = vpack.c.b16 %v1866, %v1865
          %v1897 = vpack.c.b16 %v1868, %v1867
          %v1898 = vpack.c.b16 %v1870, %v1869
          %v1899 = vpack.c.b16 %v1872, %v1871
          %v1900 = vpack.c.b16 %v1874, %v1873
          %v1901 = vpack.c.b16 %v1876, %v1875
          %v1902 = vpack.c.b16 %v1878, %v1877
          %v1903 = vpack.c.b16 %v1880, %v1879
          %v1904 = vpack.c.b16 %v1882, %v1881
          %v1905 = vpack.c.b16 %v1884, %v1883
          %v1906 = vpack.c.b16 %v1886, %v1885
          %v1907 = vpack.c.b16 %v1888, %v1887
          %v1908 = vpack.c.b16 %v1890, %v1889
          %v1909 = vpack.c.b16 %v1892, %v1891
          %v1910 = vpack.c.b16 %v1894, %v1893
          %1927 = vmatprep.subr.bf16.mxu0 0
          %1928 = vmatpush1.bf16.msra.mxu0 %v1902
          %1929 = vmatprep.subr.bf16.mxu0 0
          %1930 = vmatpush1.bf16.msra.mxu0 %v1901
          %1931 = vmatprep.subr.bf16.mxu0 0
          %1932 = vmatpush1.bf16.msra.mxu0 %v1900
          %1933 = vmatprep.subr.bf16.mxu0 0
          %1934 = vmatpush1.bf16.msra.mxu0 %v1899
          %1935 = vmatprep.subr.bf16.mxu0 0
          %1936 = vmatpush1.bf16.msra.mxu0 %v1898
          %1937 = vmatprep.subr.bf16.mxu0 0
          %1938 = vmatpush1.bf16.msra.mxu0 %v1897
          %1939 = vmatprep.subr.bf16.mxu0 0
          %1940 = vmatpush1.bf16.msra.mxu0 %v1896
          %1941 = vmatprep.subr.bf16.mxu0 0
          %1942 = vmatpush1.bf16.msra.mxu0 %v1895
          %1943 = vmatprep.subr.bf16.mxu0 0
          %1944 = vmatpush2.bf16.msra.mxu0 %v1910
          %1945 = vmatprep.subr.bf16.mxu0 0
          %1946 = vmatpush2.bf16.msra.mxu0 %v1909
          %1947 = vmatprep.subr.bf16.mxu0 0
          %1948 = vmatpush2.bf16.msra.mxu0 %v1908
          %1949 = vmatprep.subr.bf16.mxu0 0
          %1950 = vmatpush2.bf16.msra.mxu0 %v1907
          %1951 = vmatprep.subr.bf16.mxu0 0
          %1952 = vmatpush2.bf16.msra.mxu0 %v1906
          %1953 = vmatprep.subr.bf16.mxu0 0
          %1954 = vmatpush2.bf16.msra.mxu0 %v1905
          %1955 = vmatprep.subr.bf16.mxu0 0
          %1956 = vmatpush2.bf16.msra.mxu0 %v1904
          %1957 = vmatprep.subr.bf16.mxu0 0
          %1958 = vmatpush2.bf16.msra.mxu0 %v1903
          %1959 = vmatprep.mubr.bf16.mxu0 %v1764
          %1960 = vmatmul.mubr.bf16.gmra.mxu0 %v1784
          %v1961 = vpop.f32.mrf.mxu0
          %v1962 = vadd.f32 %v1829, %v1961
          %v1963 = vpop.f32.mrf.mxu0
          %v1964 = vpop.f32.mrf.mxu0
          %v1965 = vadd.f32 %v1829, %v1964
          %v1966 = vpop.f32.mrf.mxu0
          %1967 = vmatprep.mubr.bf16.mxu0 %v1765
          %1968 = vmatmul.mubr.bf16.gmra.mxu0 %v1785
          %v1969 = vpop.f32.mrf.mxu0
          %v1970 = vadd.f32 %v1829, %v1969
          %v1971 = vpop.f32.mrf.mxu0
          %v1972 = vpop.f32.mrf.mxu0
          %v1973 = vadd.f32 %v1829, %v1972
          %v1974 = vpop.f32.mrf.mxu0
          %1975 = vmatprep.mubr.bf16.mxu0 %v1766
          %1976 = vmatmul.mubr.bf16.gmra.mxu0 %v1786
          %v1977 = vpop.f32.mrf.mxu0
          %v1978 = vadd.f32 %v1829, %v1977
          %v1979 = vpop.f32.mrf.mxu0
          %v1980 = vpop.f32.mrf.mxu0
          %v1981 = vadd.f32 %v1829, %v1980
          %v1982 = vpop.f32.mrf.mxu0
          %1983 = vmatprep.mubr.bf16.mxu0 %v1767
          %1984 = vmatmul.mubr.bf16.gmra.mxu0 %v1787
          %v1985 = vpop.f32.mrf.mxu0
          %v1986 = vadd.f32 %v1829, %v1985
          %v1987 = vpop.f32.mrf.mxu0
          %v1988 = vpop.f32.mrf.mxu0
          %v1989 = vadd.f32 %v1829, %v1988
          %v1990 = vpop.f32.mrf.mxu0
          %1991 = vdwg.mxu0
          %v1992 = vadd.f32 %v1962, %v1965
          %v1993 = vadd.f32 %v1992, %v1970
          %v1994 = vadd.f32 %v1993, %v1973
          %v1995 = vadd.f32 %v1994, %v1978
          %v1996 = vadd.f32 %v1995, %v1981
          %v1997 = vadd.f32 %v1996, %v1986
          %v1998 = vadd.f32 %v1997, %v1989
          %v1999 = vrot.slane %v1998, 4
          %v2000 = vadd.f32 %v1998, %v1999
          %v2001 = vrot.slane %v2000, 2
          %v2002 = vadd.f32 %v2000, %v2001
          %v2003 = vrot.slane %v2002, 1
          %v2004 = vadd.f32 %v2002, %v2003
          %v2005 = vmul.f32 %v2004, 0.015625
          %v2006 = vmul.f32 %v1962, %v1962
          %v2007 = vmul.f32 %v1965, %v1965
          %v2008 = vmul.f32 %v1970, %v1970
          %v2009 = vmul.f32 %v1973, %v1973
          %v2010 = vmul.f32 %v1978, %v1978
          %v2011 = vmul.f32 %v1981, %v1981
          %v2012 = vmul.f32 %v1986, %v1986
          %v2013 = vmul.f32 %v1989, %v1989
          %v2014 = vadd.f32 %v2006, %v2007
          %v2015 = vadd.f32 %v2014, %v2008
          %v2016 = vadd.f32 %v2015, %v2009
          %v2017 = vadd.f32 %v2016, %v2010
          %v2018 = vadd.f32 %v2017, %v2011
          %v2019 = vadd.f32 %v2018, %v2012
          %v2020 = vadd.f32 %v2019, %v2013
          %v2021 = vrot.slane %v2020, 4
          %v2022 = vadd.f32 %v2020, %v2021
          %v2023 = vrot.slane %v2022, 2
          %v2024 = vadd.f32 %v2022, %v2023
          %v2025 = vrot.slane %v2024, 1
          %v2026 = vadd.f32 %v2024, %v2025
          %v2027 = vmul.f32 %v2026, 0.015625
          %v2028 = vmul.f32 %v2005, %v2005
          %v2029 = vsub.f32 %v2027, %v2028
          %v2030 = vsub.f32 %v1962, %v2005
          %v2031 = vsub.f32 %v1965, %v2005
          %v2032 = vsub.f32 %v1970, %v2005
          %v2033 = vsub.f32 %v1973, %v2005
          %v2034 = vsub.f32 %v1978, %v2005
          %v2035 = vsub.f32 %v1981, %v2005
          %v2036 = vsub.f32 %v1986, %v2005
          %v2037 = vsub.f32 %v1989, %v2005
          %v2038 = vadd.f32 %v2029, 1e-05
          %v2039 = vrsqrt.pop %v2038
          %v2040 = vmul.f32 %v2030, %v2039
          %v2041 = vmul.f32 %v2031, %v2039
          %v2042 = vmul.f32 %v2032, %v2039
          %v2043 = vmul.f32 %v2033, %v2039
          %v2044 = vmul.f32 %v2034, %v2039
          %v2045 = vmul.f32 %v2035, %v2039
          %v2046 = vmul.f32 %v2036, %v2039
          %v2047 = vmul.f32 %v2037, %v2039
          %v2048 = vld [vmem:[%s10] sm:$0x1]
          %v2050 = vlaneseq
          %v2051 = vshrl.u32 %v2050, 7
          %v2052 = vsub.s32 0, %v2051
          %v2053 = vrot.slane %v2048, %v2052
          %v2055 = vmul.f32 %v2040, %v2053
          %v2056 = vmul.f32 %v2041, %v2053
          %v2057 = vmul.f32 %v2042, %v2053
          %v2058 = vmul.f32 %v2043, %v2053
          %v2059 = vmul.f32 %v2044, %v2053
          %v2060 = vmul.f32 %v2045, %v2053
          %v2061 = vmul.f32 %v2046, %v2053
          %v2062 = vmul.f32 %v2047, %v2053
          %v2063 = vld [vmem:[%s11] sm:$0x1]
          %v2065 = vlaneseq
          %v2066 = vshrl.u32 %v2065, 7
          %v2067 = vsub.s32 0, %v2066
          %v2068 = vrot.slane %v2063, %v2067
          %v2070 = vadd.f32 %v2055, %v2068
          %v2071 = vadd.f32 %v2056, %v2068
          %v2072 = vadd.f32 %v2057, %v2068
          %v2073 = vadd.f32 %v2058, %v2068
          %v2074 = vadd.f32 %v2059, %v2068
          %v2075 = vadd.f32 %v2060, %v2068
          %v2076 = vadd.f32 %v2061, %v2068
          %v2077 = vadd.f32 %v2062, %v2068
          %vm2078 = vcmp.gt.f32.partialorder %v2070, 0.0
          %vm2079 = vcmp.gt.f32.partialorder %v2071, 0.0
          %vm2080 = vcmp.gt.f32.partialorder %v2072, 0.0
          %vm2081 = vcmp.gt.f32.partialorder %v2073, 0.0
          %vm2082 = vcmp.gt.f32.partialorder %v2074, 0.0
          %vm2083 = vcmp.gt.f32.partialorder %v2075, 0.0
          %vm2084 = vcmp.gt.f32.partialorder %v2076, 0.0
          %vm2085 = vcmp.gt.f32.partialorder %v2077, 0.0
          %v2086 = vmin.f32 %v2070, 0.0
          %v2087 = vmin.f32 %v2071, 0.0
          %v2088 = vmin.f32 %v2072, 0.0
          %v2089 = vmin.f32 %v2073, 0.0
          %v2090 = vmin.f32 %v2074, 0.0
          %v2091 = vmin.f32 %v2075, 0.0
          %v2092 = vmin.f32 %v2076, 0.0
          %v2093 = vmin.f32 %v2077, 0.0
          %v2094 = vmul.f32 %v2086, 1.442695
          %v2095 = vpow.pop %v2094
          %v2096 = vmul.f32 %v2087, 1.442695
          %v2097 = vpow.pop %v2096
          %v2098 = vmul.f32 %v2088, 1.442695
          %v2099 = vpow.pop %v2098
          %v2100 = vmul.f32 %v2089, 1.442695
          %v2101 = vpow.pop %v2100
          %v2102 = vmul.f32 %v2090, 1.442695
          %v2103 = vpow.pop %v2102
          %v2104 = vmul.f32 %v2091, 1.442695
          %v2105 = vpow.pop %v2104
          %v2106 = vmul.f32 %v2092, 1.442695
          %v2107 = vpow.pop %v2106
          %v2108 = vmul.f32 %v2093, 1.442695
          %v2109 = vpow.pop %v2108
          %v2110 = vsub.f32 %v2095, 1.0
          %v2111 = vsub.f32 %v2097, 1.0
          %v2112 = vsub.f32 %v2099, 1.0
          %v2113 = vsub.f32 %v2101, 1.0
          %v2114 = vsub.f32 %v2103, 1.0
          %v2115 = vsub.f32 %v2105, 1.0
          %v2116 = vsub.f32 %v2107, 1.0
          %v2117 = vsub.f32 %v2109, 1.0
          %v2118 = vsel %vm2078, %v2070, %v2110
          %v2119 = vsel %vm2079, %v2071, %v2111
          %v2120 = vsel %vm2080, %v2072, %v2112
          %v2121 = vsel %vm2081, %v2073, %v2113
          %v2122 = vsel %vm2082, %v2074, %v2114
          %v2123 = vsel %vm2083, %v2075, %v2115
          %v2124 = vsel %vm2084, %v2076, %v2116
          %v2125 = vsel %vm2085, %v2077, %v2117
          %2126 = vst [vmem:[#allocation11] sm:$0xff] %v2118
          %2127 = vst [vmem:[#allocation11 + $0x8] sm:$0xff] %v2119
          %2128 = vst [vmem:[#allocation11 + $0x10] sm:$0xff] %v2120
          %2129 = vst [vmem:[#allocation11 + $0x18] sm:$0xff] %v2121
          %2130 = vst [vmem:[#allocation11 + $0x20] sm:$0xff] %v2122
          %2131 = vst [vmem:[#allocation11 + $0x28] sm:$0xff] %v2123
          %2132 = vst [vmem:[#allocation11 + $0x30] sm:$0xff] %v2124
          %2133 = vst [vmem:[#allocation11 + $0x38] sm:$0xff] %v2125
        $region92: #{tpu_custom_call.1} parent=67 // pred_fallthru
          _
        // Predicated region
        $region93: #{tpu_custom_call.1} parent=67 // pred_check
          %p2134 = pneg %p318
        $region94: #{tpu_custom_call.1} parent=67 // pred_check_branch
          %2136 = sbr.rel (%p2134) target = $region96
        $region95: #{tpu_custom_call.1} parent=67 // pred_region
          %s2138 = ssub.s32 1024, 1024
          %2139 = vsyncadd [#allocation8], %s2138
          %s2140 = sshll.u32 [#allocation11], 4
          %s2141 = int_to_ptr.vmem [resolvable:$true] %s2140
          %2146 = dma.vmem_to_hbm [thread:$0]  %s2141, 1024, %s12, [#allocation8], 128, 128, 8
        $region96: #{tpu_custom_call.1} parent=67 // pred_fallthru
          _
        // Predicated region
        $region97: #{tpu_custom_call.1} parent=67 // pred_check
          %p2147 = pneg %p318
        $region98: #{tpu_custom_call.1} parent=67 // pred_check_branch
          %2149 = sbr.rel (%p2147) target = $region100
        $region99: #{tpu_custom_call.1} parent=67 // pred_region
          %2150 = dma.done [#allocation8], 1024
        $region100: #{tpu_custom_call.1} parent=67 // pred_fallthru
          _
      $region68: #{tpu_custom_call.1} parent=5 // pred_fallthru
        _
      %p2151 = scmp.le.s32.totalorder 2, %s21
      // Predicated region
      $region101: #{tpu_custom_call.1} parent=5 // pred_check
        %p2152 = pneg %p2151
      $region102: #{tpu_custom_call.1} parent=5 // pred_check_branch
        %2154 = sbr.rel (%p2152) target = $region104
      $region103: #{tpu_custom_call.1} parent=5 // pred_region
        %s2155 = ssub.s32 %s21, 2
      $region104: #{tpu_custom_call.1} parent=5 // pred_fallthru
        _
    $region6: #{tpu_custom_call.1} parent=1 // loop_footer
      %s25 = sadd.s32 1, %s21
    $region7: #{tpu_custom_call.1} parent=1 // loop_footer_branch
      %20 = sbr.rel target = $region3
    $region8: #{tpu_custom_call.1} parent=1 // loop_exit
      _
    %2156 = vsyncpa [#allocation7], 1
    %s2157 = scalar_lea.sflag [#allocation7], 1
    %2158 = vsyncpa %s2157, 1
    %2159 = vsyncpa [#allocation10], 1
    %2160 = vsyncpa [#allocation8], 1
    %s2161 = scalar_lea.sflag [#allocation8], 1
    %2162 = vsyncpa %s2161, 1

</llo_original>
